<compile_context>
chip_gen: v5e
topology: v5e:2x2
jax: 0.10.0
libtpu: 0.0.40
codegen_flags: <defaults>
</compile_context>

<pallas_src>
import math

import jax
import jax.numpy as jnp
from jax.experimental import pallas as pl
from jax.experimental.pallas import tpu as pltpu

IN_FEATURES = 1024
LATENT = 256


def _ru(x, m):
    return ((x + m - 1) // m) * m


# ----------------------------------------------------------------------------
# Pallas kernel: fused compress + decompress for one (tm, 1024) block of rows.
# ----------------------------------------------------------------------------
def _wm_latent_kernel(x_ref, w1_ref, b1_ref, w2_ref, b2_ref, lat_ref, dec_ref):
    # In-kernel f32 -> bf16 cast (free VPU work, hidden under the MXU).
    x = x_ref[...].astype(jnp.bfloat16)                       # (tm, 1024)
    # compress: (tm, 1024) @ (1024, 256) -> f32 accumulation on the MXU
    lat = jnp.dot(x, w1_ref[...], preferred_element_type=jnp.float32)
    lat = lat + b1_ref[...]                                   # f32 bias add
    lat_ref[...] = lat                                        # latent out (f32)
    # decompress: (tm, 256) @ (256, 1024) -> f32; latent stays resident in VMEM
    dec = jnp.dot(lat.astype(jnp.bfloat16), w2_ref[...],
                  preferred_element_type=jnp.float32)
    dec = dec + b2_ref[...]                                   # f32 bias add
    dec_ref[...] = dec.astype(jnp.bfloat16)                   # bf16 store (halves HBM writeback)


# ----------------------------------------------------------------------------
# Parameters
# ----------------------------------------------------------------------------
def init_params(key):
    """PyTorch-style Linear params: weight (out, in), bias (out,), f32."""
    k1, k2, k3, k4 = jax.random.split(key, 4)
    s1 = 1.0 / math.sqrt(IN_FEATURES)
    s2 = 1.0 / math.sqrt(LATENT)
    return {
        "compress_w": jax.random.uniform(k1, (LATENT, IN_FEATURES),
                                         jnp.float32, -s1, s1),
        "compress_b": jax.random.uniform(k2, (LATENT,), jnp.float32, -s1, s1),
        "decompress_w": jax.random.uniform(k3, (IN_FEATURES, LATENT),
                                           jnp.float32, -s2, s2),
        "decompress_b": jax.random.uniform(k4, (IN_FEATURES,),
                                           jnp.float32, -s2, s2),
    }


def prepare_params(params):
    """One-time GEMM-layout preparation (transpose + bf16 cast)."""
    return {
        "w1": params["compress_w"].T.astype(jnp.bfloat16),        # (1024, 256)
        "b1": params["compress_b"].reshape(1, LATENT).astype(jnp.float32),
        "w2": params["decompress_w"].T.astype(jnp.bfloat16),      # (256, 1024)
        "b2": params["decompress_b"].reshape(1, IN_FEATURES).astype(jnp.float32),
    }


# ----------------------------------------------------------------------------
# Tile selection
# ----------------------------------------------------------------------------
def _pick_tm(n_rows):
    if n_rows <= 8:
        # Tiny batch: single block whose row dim equals the full array dim
        # (weight-read / launch bound regardless of tiling).
        return n_rows
    tm = min(512, _ru(n_rows, 8))
    if pl.cdiv(n_rows, tm) == 1:
        # Prefer >=2 parallel grid steps so v7x megacore can use both TCs.
        tm = _ru(pl.cdiv(n_rows, 2), 8)
    return tm


# ----------------------------------------------------------------------------
# Forward pass (matches WMLatent.forward)
# ----------------------------------------------------------------------------
def wm_latent_forward(prepared, x):
    N = x.shape[0]
    flat = x.reshape(N, -1).astype(jnp.float32)               # flatten (stays f32)
    assert flat.shape[1] == IN_FEATURES, flat.shape

    tm = _pick_tm(N)
    grid = (pl.cdiv(N, tm),)                                  # ragged tail masked by Pallas

    flops = 4 * N * IN_FEATURES * LATENT                      # two GEMMs
    bytes_accessed = (N * IN_FEATURES * 4                     # x read   (f32)
                      + N * LATENT * 4                        # latent   (f32)
                      + N * IN_FEATURES * 2                   # dec      (bf16)
                      + 2 * IN_FEATURES * LATENT * 2          # weights  (bf16)
                      + (LATENT + IN_FEATURES) * 4)           # biases   (f32)

    lat, dec = pl.pallas_call(
        _wm_latent_kernel,
        out_shape=(jax.ShapeDtypeStruct((N, LATENT), jnp.float32),
                   jax.ShapeDtypeStruct((N, IN_FEATURES), jnp.bfloat16)),
        grid=grid,
        in_specs=[
            pl.BlockSpec((tm, IN_FEATURES), lambda i: (i, 0)),      # x rows (f32)
            pl.BlockSpec((IN_FEATURES, LATENT), lambda i: (0, 0)),  # w1 (whole)
            pl.BlockSpec((1, LATENT), lambda i: (0, 0)),            # b1
            pl.BlockSpec((LATENT, IN_FEATURES), lambda i: (0, 0)),  # w2 (whole)
            pl.BlockSpec((1, IN_FEATURES), lambda i: (0, 0)),       # b2
        ],
        out_specs=(pl.BlockSpec((tm, LATENT), lambda i: (i, 0)),
                   pl.BlockSpec((tm, IN_FEATURES), lambda i: (i, 0))),
        compiler_params=pltpu.CompilerParams(
            dimension_semantics=("parallel",)),
        cost_estimate=pl.CostEstimate(flops=flops, transcendentals=0,
                                      bytes_accessed=bytes_accessed),
    )(flat, prepared["w1"], prepared["b1"], prepared["w2"], prepared["b2"])

    x_out = dec.reshape(N, IN_FEATURES, 1, 1)                 # unflatten (bf16)
    return x_out, lat


# ----------------------------------------------------------------------------
# Reference (plain JAX, f32) for a correctness sanity check.
# ----------------------------------------------------------------------------
def _reference(params, x):
    N = x.shape[0]
    flat = x.reshape(N, -1)
    lat = flat @ params["compress_w"].T + params["compress_b"]
    dec = lat @ params["decompress_w"].T + params["decompress_b"]
    return dec.reshape(N, IN_FEATURES, 1, 1), lat


if __name__ == "__main__":
    key = jax.random.PRNGKey(0)
    pkey, xkey, xkey2 = jax.random.split(key, 3)

    params = init_params(pkey)
    prepared = prepare_params(params)

    # Small batch; spatial layout (2, 256, 2, 2) flattens to the required 1024
    # features (the Linear(1024, 256) fixes the feature count).
    x = jax.random.normal(xkey, (2, 256, 2, 2), jnp.float32)

    fwd = jax.jit(wm_latent_forward)
    out, latent = fwd(prepared, x)
    jax.block_until_ready((out, latent))

    assert out.shape == (2, IN_FEATURES, 1, 1), out.shape
    assert latent.shape == (2, LATENT), latent.shape
    assert bool(jnp.all(jnp.isfinite(out.astype(jnp.float32))))
    assert bool(jnp.all(jnp.isfinite(latent)))

    ref_out, ref_lat = _reference(params, x)
    assert jnp.allclose(latent, ref_lat, atol=5e-2, rtol=5e-2)
    assert jnp.allclose(out.astype(jnp.float32), ref_out, atol=5e-2, rtol=5e-2)

    # Ragged / multi-step-grid path (N not a multiple of the tile, no pad).
    x2 = jax.random.normal(xkey2, (34, 256, 2, 2), jnp.float32)
    out2, lat2 = fwd(prepared, x2)
    jax.block_until_ready((out2, lat2))
    ref_out2, ref_lat2 = _reference(params, x2)
    assert jnp.allclose(lat2, ref_lat2, atol=5e-2, rtol=5e-2)
    assert jnp.allclose(out2.astype(jnp.float32), ref_out2, atol=5e-2, rtol=5e-2)

    print("KERNEL_OK")
</pallas_src>

<mosaic_0001>
module attributes {stable_mosaic.version = 11 : i64} {
  func.func @_wm_latent_kernel(%arg0: i32, %arg1: memref<2x1024xf32, #tpu.memory_space<vmem>>, %arg2: memref<1024x256xbf16, #tpu.memory_space<vmem>>, %arg3: memref<1x256xf32, #tpu.memory_space<vmem>>, %arg4: memref<256x1024xbf16, #tpu.memory_space<vmem>>, %arg5: memref<1x1024xf32, #tpu.memory_space<vmem>>, %arg6: memref<2x256xf32, #tpu.memory_space<vmem>>, %arg7: memref<2x1024xbf16, #tpu.memory_space<vmem>>) attributes {dimension_semantics = [#tpu.dimension_semantics<parallel>], iteration_bounds = array<i64: 1>, scalar_prefetch = 0 : i64, scratch_operands = 0 : i64, tpu.core_type = #tpu.core_type<tc>, window_params = [{transform_indices = @transform_0, window_bounds = array<i64: 2, 1024>}, {pipeline_mode = #tpu.pipeline_mode<synchronous>, transform_indices = @transform_1, window_bounds = array<i64: 1024, 256>}, {pipeline_mode = #tpu.pipeline_mode<synchronous>, transform_indices = @transform_2, window_bounds = array<i64: 1, 256>}, {pipeline_mode = #tpu.pipeline_mode<synchronous>, transform_indices = @transform_3, window_bounds = array<i64: 256, 1024>}, {pipeline_mode = #tpu.pipeline_mode<synchronous>, transform_indices = @transform_4, window_bounds = array<i64: 1, 1024>}, {transform_indices = @transform_5, window_bounds = array<i64: 2, 256>}, {transform_indices = @transform_6, window_bounds = array<i64: 2, 1024>}]} {
    %c0 = arith.constant 0 : index
    %c0_0 = arith.constant 0 : index
    %0 = vector.load %arg1[%c0, %c0_0] : memref<2x1024xf32, #tpu.memory_space<vmem>>, vector<2x1024xf32>
    %1 = arith.truncf %0 : vector<2x1024xf32> to vector<2x1024xbf16>
    %c0_1 = arith.constant 0 : index
    %c0_2 = arith.constant 0 : index
    %2 = vector.load %arg2[%c0_1, %c0_2] : memref<1024x256xbf16, #tpu.memory_space<vmem>>, vector<1024x256xbf16>
    %cst = arith.constant dense<0.000000e+00> : vector<2x256xf32>
    %3 = tpu.matmul %1, %2, %cst {dimension_numbers = #tpu.dot_dimension_numbers<[1], [0], [0], [1], [0, 0, 1, 1], [], []>} : vector<2x1024xbf16>, vector<1024x256xbf16>, vector<2x256xf32> -> vector<2x256xf32>
    %c0_3 = arith.constant 0 : index
    %c0_4 = arith.constant 0 : index
    %4 = vector.load %arg3[%c0_3, %c0_4] : memref<1x256xf32, #tpu.memory_space<vmem>>, vector<1x256xf32>
    %5 = vector.broadcast %4 : vector<1x256xf32> to vector<2x256xf32>
    %6 = arith.addf %3, %5 : vector<2x256xf32>
    %c0_5 = arith.constant 0 : index
    %c0_6 = arith.constant 0 : index
    %7 = vector.load %arg6[%c0_5, %c0_6] : memref<2x256xf32, #tpu.memory_space<vmem>>, vector<2x256xf32>
    tpu.vector_store %arg6[%c0_5, %c0_6], %6 {strides = array<i32>} : memref<2x256xf32, #tpu.memory_space<vmem>>, vector<2x256xf32>,
    %8 = arith.truncf %6 : vector<2x256xf32> to vector<2x256xbf16>
    %c0_7 = arith.constant 0 : index
    %c0_8 = arith.constant 0 : index
    %9 = vector.load %arg4[%c0_7, %c0_8] : memref<256x1024xbf16, #tpu.memory_space<vmem>>, vector<256x1024xbf16>
    %cst_9 = arith.constant dense<0.000000e+00> : vector<2x1024xf32>
    %10 = tpu.matmul %8, %9, %cst_9 {dimension_numbers = #tpu.dot_dimension_numbers<[1], [0], [0], [1], [0, 0, 1, 1], [], []>} : vector<2x256xbf16>, vector<256x1024xbf16>, vector<2x1024xf32> -> vector<2x1024xf32>
    %c0_10 = arith.constant 0 : index
    %c0_11 = arith.constant 0 : index
    %11 = vector.load %arg5[%c0_10, %c0_11] : memref<1x1024xf32, #tpu.memory_space<vmem>>, vector<1x1024xf32>
    %12 = vector.broadcast %11 : vector<1x1024xf32> to vector<2x1024xf32>
    %13 = arith.addf %10, %12 : vector<2x1024xf32>
    %14 = arith.truncf %13 : vector<2x1024xf32> to vector<2x1024xbf16>
    %c0_12 = arith.constant 0 : index
    %c0_13 = arith.constant 0 : index
    %15 = vector.load %arg7[%c0_12, %c0_13] : memref<2x1024xbf16, #tpu.memory_space<vmem>>, vector<2x1024xbf16>
    tpu.vector_store %arg7[%c0_12, %c0_13], %14 {strides = array<i32>} : memref<2x1024xbf16, #tpu.memory_space<vmem>>, vector<2x1024xbf16>,
    return
  }
  func.func @transform_0(%arg0: i32) -> (i32, i32) {
    %c0_i32 = arith.constant 0 : i32
    %c0_i32_0 = arith.constant 0 : i32
    return %arg0, %c0_i32 : i32, i32
  }
  func.func @transform_1(%arg0: i32) -> (i32, i32) {
    %c0_i32 = arith.constant 0 : i32
    %c0_i32_0 = arith.constant 0 : i32
    %c0_i32_1 = arith.constant 0 : i32
    return %c0_i32, %c0_i32_0 : i32, i32
  }
  func.func @transform_2(%arg0: i32) -> (i32, i32) {
    %c0_i32 = arith.constant 0 : i32
    %c0_i32_0 = arith.constant 0 : i32
    %c0_i32_1 = arith.constant 0 : i32
    return %c0_i32, %c0_i32_0 : i32, i32
  }
  func.func @transform_3(%arg0: i32) -> (i32, i32) {
    %c0_i32 = arith.constant 0 : i32
    %c0_i32_0 = arith.constant 0 : i32
    %c0_i32_1 = arith.constant 0 : i32
    return %c0_i32, %c0_i32_0 : i32, i32
  }
  func.func @transform_4(%arg0: i32) -> (i32, i32) {
    %c0_i32 = arith.constant 0 : i32
    %c0_i32_0 = arith.constant 0 : i32
    %c0_i32_1 = arith.constant 0 : i32
    return %c0_i32, %c0_i32_0 : i32, i32
  }
  func.func @transform_5(%arg0: i32) -> (i32, i32) {
    %c0_i32 = arith.constant 0 : i32
    %c0_i32_0 = arith.constant 0 : i32
    return %arg0, %c0_i32 : i32, i32
  }
  func.func @transform_6(%arg0: i32) -> (i32, i32) {
    %c0_i32 = arith.constant 0 : i32
    %c0_i32_0 = arith.constant 0 : i32
    return %arg0, %c0_i32 : i32, i32
  }
}

</mosaic_0001>

<llo_original>
// kernel: wm_latent_forward.1
$region0: #{wm_latent_forward.1}
  #allocation0 [shape = 'u32[]', space=smem, size = 0x4, offset = 0x4, fixed_abs, tag = 'smem constant byte address 0x4 - core index']
  #allocation1 [shape = 'u32[72,128]{1,0:T(1,128)}', space=vmem, size = 0x9000, scoped, tag = 'internal scratch']
  %s0 = inlined_call_operand.vmem [shape: f32[2,1024], index: 0, kind: input, shape index: {}]
  %s1 = inlined_call_operand.vmem [shape: bf16[1024,256], index: 1, kind: input, shape index: {}]
  %s2 = inlined_call_operand.vmem [shape: f32[1,256], index: 2, kind: input, shape index: {}]
  %s3 = inlined_call_operand.vmem [shape: bf16[256,1024], index: 3, kind: input, shape index: {}]
  %s4 = inlined_call_operand.vmem [shape: f32[1,1024], index: 4, kind: input, shape index: {}]
  %s5 = inlined_call_operand.hbm [shape: f32[2,256], index: 5, kind: output, shape index: {0}]
  %s6 = inlined_call_operand.hbm [shape: bf16[2,1024], index: 6, kind: output, shape index: {1}]
  %7 = xla_tuple %s5, %s6
  %s8 = sld [smem:[#allocation0]]
  $region38: #{wm_latent_forward.1} parent=0
    _
  %s10 = ssub.s32 1, %s8
  %s11 = scalar_select 0, %s10, %s8
  $region1: #{wm_latent_forward.1} parent=0
    #allocation2 [shape = 'u8[2048]{0}', space=vmem, size = 0x800, scoped, tag = 'output window, operand 0, single buffered']
    #allocation3 [shape = 's32[1]{0}', space=sflag, size = 0x4, scoped, tag = 'scoped memory for wm_latent_forward.1']
    #allocation4 [shape = 'u8[4096]{0}', space=vmem, size = 0x1000, scoped, tag = 'output window, operand 1, single buffered']
    #allocation5 [shape = 's32[1]{0}', space=sflag, size = 0x4, scoped, tag = 'scoped memory for wm_latent_forward.1']
    %12 = vsyncpa [#allocation3], 0
    %13 = vsyncpa [#allocation5], 0
    // Predicated region
    $region2: #{wm_latent_forward.1} parent=1 // pred_check
      _
    $region3: #{wm_latent_forward.1} parent=1 // pred_check_branch
      %15 = sbr.rel (0) target = $region5
    $region4: #{wm_latent_forward.1} parent=1 // pred_region
      _
    $region5: #{wm_latent_forward.1} parent=1 // pred_fallthru
      _
    // Predicated region
    $region6: #{wm_latent_forward.1} parent=1 // pred_check
      _
    $region7: #{wm_latent_forward.1} parent=1 // pred_check_branch
      %17 = sbr.rel (0) target = $region9
    $region8: #{wm_latent_forward.1} parent=1 // pred_region
      _
    $region9: #{wm_latent_forward.1} parent=1 // pred_fallthru
      _
    // Predicated region
    $region10: #{wm_latent_forward.1} parent=1 // pred_check
      _
    $region11: #{wm_latent_forward.1} parent=1 // pred_check_branch
      %19 = sbr.rel (0) target = $region13
    $region12: #{wm_latent_forward.1} parent=1 // pred_region
      _
    $region13: #{wm_latent_forward.1} parent=1 // pred_fallthru
      _
    // Predicated region
    $region14: #{wm_latent_forward.1} parent=1 // pred_check
      _
    $region15: #{wm_latent_forward.1} parent=1 // pred_check_branch
      %21 = sbr.rel (0) target = $region17
    $region16: #{wm_latent_forward.1} parent=1 // pred_region
      _
    $region17: #{wm_latent_forward.1} parent=1 // pred_fallthru
      _
    // Predicated region
    $region18: #{wm_latent_forward.1} parent=1 // pred_check
      _
    $region19: #{wm_latent_forward.1} parent=1 // pred_check_branch
      %23 = sbr.rel (0) target = $region21
    $region20: #{wm_latent_forward.1} parent=1 // pred_region
      _
    $region21: #{wm_latent_forward.1} parent=1 // pred_fallthru
      _
    %v24 = vld [vmem:[%s0] sm:$0xff]
    %v25 = vld [vmem:[%s0 + $0x8] sm:$0xff]
    %28 = vst [vmem:[#allocation1] ss:$4 sm:$0xff] %v24
    %s29 = scalar_lea.vmem [#allocation1], 32
    %30 = vst [vmem:[%s29] ss:$4 sm:$0xff] %v25
    %v31 = vld.sshfl [vmem:[#allocation1] sm:$0xff pattern:$0x73625140]
    %v32 = vld.sshfl [vmem:[#allocation1 + $0x8] sm:$0xff pattern:$0x73625140]
    %v33 = vld.sshfl [vmem:[#allocation1 + $0x10] sm:$0xff pattern:$0x73625140]
    %v34 = vld.sshfl [vmem:[#allocation1 + $0x18] sm:$0xff pattern:$0x73625140]
    %v35 = vld.sshfl [vmem:[#allocation1 + $0x20] sm:$0xff pattern:$0x73625140]
    %v36 = vld.sshfl [vmem:[#allocation1 + $0x28] sm:$0xff pattern:$0x73625140]
    %v37 = vld.sshfl [vmem:[#allocation1 + $0x30] sm:$0xff pattern:$0x73625140]
    %v38 = vld.sshfl [vmem:[#allocation1 + $0x38] sm:$0xff pattern:$0x73625140]
    %v47 = vpack.c.bf16 %v31, %v31
    %v48 = vpack.c.bf16 %v32, %v32
    %v49 = vpack.c.bf16 %v33, %v33
    %v50 = vpack.c.bf16 %v34, %v34
    %v51 = vpack.c.bf16 %v35, %v35
    %v52 = vpack.c.bf16 %v36, %v36
    %v53 = vpack.c.bf16 %v37, %v37
    %v54 = vpack.c.bf16 %v38, %v38
    %v55 = vld [vmem:[%s1] sm:$0xff]
    %v56 = vld [vmem:[%s1 + $0x8] sm:$0xff]
    %v57 = vld [vmem:[%s1 + $0x10] sm:$0xff]
    %v58 = vld [vmem:[%s1 + $0x18] sm:$0xff]
    %v59 = vld [vmem:[%s1 + $0x20] sm:$0xff]
    %v60 = vld [vmem:[%s1 + $0x28] sm:$0xff]
    %v61 = vld [vmem:[%s1 + $0x30] sm:$0xff]
    %v62 = vld [vmem:[%s1 + $0x38] sm:$0xff]
    %v63 = vld [vmem:[%s1 + $0x40] sm:$0xff]
    %v64 = vld [vmem:[%s1 + $0x48] sm:$0xff]
    %v65 = vld [vmem:[%s1 + $0x50] sm:$0xff]
    %v66 = vld [vmem:[%s1 + $0x58] sm:$0xff]
    %v67 = vld [vmem:[%s1 + $0x60] sm:$0xff]
    %v68 = vld [vmem:[%s1 + $0x68] sm:$0xff]
    %v69 = vld [vmem:[%s1 + $0x70] sm:$0xff]
    %v70 = vld [vmem:[%s1 + $0x78] sm:$0xff]
    %v71 = vld [vmem:[%s1 + $0x80] sm:$0xff]
    %v72 = vld [vmem:[%s1 + $0x88] sm:$0xff]
    %v73 = vld [vmem:[%s1 + $0x90] sm:$0xff]
    %v74 = vld [vmem:[%s1 + $0x98] sm:$0xff]
    %v75 = vld [vmem:[%s1 + $0xa0] sm:$0xff]
    %v76 = vld [vmem:[%s1 + $0xa8] sm:$0xff]
    %v77 = vld [vmem:[%s1 + $0xb0] sm:$0xff]
    %v78 = vld [vmem:[%s1 + $0xb8] sm:$0xff]
    %v79 = vld [vmem:[%s1 + $0xc0] sm:$0xff]
    %v80 = vld [vmem:[%s1 + $0xc8] sm:$0xff]
    %v81 = vld [vmem:[%s1 + $0xd0] sm:$0xff]
    %v82 = vld [vmem:[%s1 + $0xd8] sm:$0xff]
    %v83 = vld [vmem:[%s1 + $0xe0] sm:$0xff]
    %v84 = vld [vmem:[%s1 + $0xe8] sm:$0xff]
    %v85 = vld [vmem:[%s1 + $0xf0] sm:$0xff]
    %v86 = vld [vmem:[%s1 + $0xf8] sm:$0xff]
    %v87 = vld [vmem:[%s1 + $0x100] sm:$0xff]
    %v88 = vld [vmem:[%s1 + $0x108] sm:$0xff]
    %v89 = vld [vmem:[%s1 + $0x110] sm:$0xff]
    %v90 = vld [vmem:[%s1 + $0x118] sm:$0xff]
    %v91 = vld [vmem:[%s1 + $0x120] sm:$0xff]
    %v92 = vld [vmem:[%s1 + $0x128] sm:$0xff]
    %v93 = vld [vmem:[%s1 + $0x130] sm:$0xff]
    %v94 = vld [vmem:[%s1 + $0x138] sm:$0xff]
    %v95 = vld [vmem:[%s1 + $0x140] sm:$0xff]
    %v96 = vld [vmem:[%s1 + $0x148] sm:$0xff]
    %v97 = vld [vmem:[%s1 + $0x150] sm:$0xff]
    %v98 = vld [vmem:[%s1 + $0x158] sm:$0xff]
    %v99 = vld [vmem:[%s1 + $0x160] sm:$0xff]
    %v100 = vld [vmem:[%s1 + $0x168] sm:$0xff]
    %v101 = vld [vmem:[%s1 + $0x170] sm:$0xff]
    %v102 = vld [vmem:[%s1 + $0x178] sm:$0xff]
    %v103 = vld [vmem:[%s1 + $0x180] sm:$0xff]
    %v104 = vld [vmem:[%s1 + $0x188] sm:$0xff]
    %v105 = vld [vmem:[%s1 + $0x190] sm:$0xff]
    %v106 = vld [vmem:[%s1 + $0x198] sm:$0xff]
    %v107 = vld [vmem:[%s1 + $0x1a0] sm:$0xff]
    %v108 = vld [vmem:[%s1 + $0x1a8] sm:$0xff]
    %v109 = vld [vmem:[%s1 + $0x1b0] sm:$0xff]
    %v110 = vld [vmem:[%s1 + $0x1b8] sm:$0xff]
    %v111 = vld [vmem:[%s1 + $0x1c0] sm:$0xff]
    %v112 = vld [vmem:[%s1 + $0x1c8] sm:$0xff]
    %v113 = vld [vmem:[%s1 + $0x1d0] sm:$0xff]
    %v114 = vld [vmem:[%s1 + $0x1d8] sm:$0xff]
    %v115 = vld [vmem:[%s1 + $0x1e0] sm:$0xff]
    %v116 = vld [vmem:[%s1 + $0x1e8] sm:$0xff]
    %v117 = vld [vmem:[%s1 + $0x1f0] sm:$0xff]
    %v118 = vld [vmem:[%s1 + $0x1f8] sm:$0xff]
    %v119 = vld [vmem:[%s1 + $0x200] sm:$0xff]
    %v120 = vld [vmem:[%s1 + $0x208] sm:$0xff]
    %v121 = vld [vmem:[%s1 + $0x210] sm:$0xff]
    %v122 = vld [vmem:[%s1 + $0x218] sm:$0xff]
    %v123 = vld [vmem:[%s1 + $0x220] sm:$0xff]
    %v124 = vld [vmem:[%s1 + $0x228] sm:$0xff]
    %v125 = vld [vmem:[%s1 + $0x230] sm:$0xff]
    %v126 = vld [vmem:[%s1 + $0x238] sm:$0xff]
    %v127 = vld [vmem:[%s1 + $0x240] sm:$0xff]
    %v128 = vld [vmem:[%s1 + $0x248] sm:$0xff]
    %v129 = vld [vmem:[%s1 + $0x250] sm:$0xff]
    %v130 = vld [vmem:[%s1 + $0x258] sm:$0xff]
    %v131 = vld [vmem:[%s1 + $0x260] sm:$0xff]
    %v132 = vld [vmem:[%s1 + $0x268] sm:$0xff]
    %v133 = vld [vmem:[%s1 + $0x270] sm:$0xff]
    %v134 = vld [vmem:[%s1 + $0x278] sm:$0xff]
    %v135 = vld [vmem:[%s1 + $0x280] sm:$0xff]
    %v136 = vld [vmem:[%s1 + $0x288] sm:$0xff]
    %v137 = vld [vmem:[%s1 + $0x290] sm:$0xff]
    %v138 = vld [vmem:[%s1 + $0x298] sm:$0xff]
    %v139 = vld [vmem:[%s1 + $0x2a0] sm:$0xff]
    %v140 = vld [vmem:[%s1 + $0x2a8] sm:$0xff]
    %v141 = vld [vmem:[%s1 + $0x2b0] sm:$0xff]
    %v142 = vld [vmem:[%s1 + $0x2b8] sm:$0xff]
    %v143 = vld [vmem:[%s1 + $0x2c0] sm:$0xff]
    %v144 = vld [vmem:[%s1 + $0x2c8] sm:$0xff]
    %v145 = vld [vmem:[%s1 + $0x2d0] sm:$0xff]
    %v146 = vld [vmem:[%s1 + $0x2d8] sm:$0xff]
    %v147 = vld [vmem:[%s1 + $0x2e0] sm:$0xff]
    %v148 = vld [vmem:[%s1 + $0x2e8] sm:$0xff]
    %v149 = vld [vmem:[%s1 + $0x2f0] sm:$0xff]
    %v150 = vld [vmem:[%s1 + $0x2f8] sm:$0xff]
    %v151 = vld [vmem:[%s1 + $0x300] sm:$0xff]
    %v152 = vld [vmem:[%s1 + $0x308] sm:$0xff]
    %v153 = vld [vmem:[%s1 + $0x310] sm:$0xff]
    %v154 = vld [vmem:[%s1 + $0x318] sm:$0xff]
    %v155 = vld [vmem:[%s1 + $0x320] sm:$0xff]
    %v156 = vld [vmem:[%s1 + $0x328] sm:$0xff]
    %v157 = vld [vmem:[%s1 + $0x330] sm:$0xff]
    %v158 = vld [vmem:[%s1 + $0x338] sm:$0xff]
    %v159 = vld [vmem:[%s1 + $0x340] sm:$0xff]
    %v160 = vld [vmem:[%s1 + $0x348] sm:$0xff]
    %v161 = vld [vmem:[%s1 + $0x350] sm:$0xff]
    %v162 = vld [vmem:[%s1 + $0x358] sm:$0xff]
    %v163 = vld [vmem:[%s1 + $0x360] sm:$0xff]
    %v164 = vld [vmem:[%s1 + $0x368] sm:$0xff]
    %v165 = vld [vmem:[%s1 + $0x370] sm:$0xff]
    %v166 = vld [vmem:[%s1 + $0x378] sm:$0xff]
    %v167 = vld [vmem:[%s1 + $0x380] sm:$0xff]
    %v168 = vld [vmem:[%s1 + $0x388] sm:$0xff]
    %v169 = vld [vmem:[%s1 + $0x390] sm:$0xff]
    %v170 = vld [vmem:[%s1 + $0x398] sm:$0xff]
    %v171 = vld [vmem:[%s1 + $0x3a0] sm:$0xff]
    %v172 = vld [vmem:[%s1 + $0x3a8] sm:$0xff]
    %v173 = vld [vmem:[%s1 + $0x3b0] sm:$0xff]
    %v174 = vld [vmem:[%s1 + $0x3b8] sm:$0xff]
    %v175 = vld [vmem:[%s1 + $0x3c0] sm:$0xff]
    %v176 = vld [vmem:[%s1 + $0x3c8] sm:$0xff]
    %v177 = vld [vmem:[%s1 + $0x3d0] sm:$0xff]
    %v178 = vld [vmem:[%s1 + $0x3d8] sm:$0xff]
    %v179 = vld [vmem:[%s1 + $0x3e0] sm:$0xff]
    %v180 = vld [vmem:[%s1 + $0x3e8] sm:$0xff]
    %v181 = vld [vmem:[%s1 + $0x3f0] sm:$0xff]
    %v182 = vld [vmem:[%s1 + $0x3f8] sm:$0xff]
    %v183 = vld [vmem:[%s2] sm:$0x3]
    %v185 = vperm.slane %v183, 0
    %v186 = vperm.slane %v183, 1
    %v317 = vunpack.c.l.b16 %v55
    %v318 = vunpack.c.h.b16 %v55
    %v319 = vunpack.c.l.b16 %v56
    %v320 = vunpack.c.h.b16 %v56
    %v321 = vunpack.c.l.b16 %v57
    %v322 = vunpack.c.h.b16 %v57
    %v323 = vunpack.c.l.b16 %v58
    %v324 = vunpack.c.h.b16 %v58
    %v325 = vunpack.c.l.b16 %v59
    %v326 = vunpack.c.h.b16 %v59
    %v327 = vunpack.c.l.b16 %v60
    %v328 = vunpack.c.h.b16 %v60
    %v329 = vunpack.c.l.b16 %v61
    %v330 = vunpack.c.h.b16 %v61
    %v331 = vunpack.c.l.b16 %v62
    %v332 = vunpack.c.h.b16 %v62
    %v333 = vunpack.c.l.b16 %v63
    %v334 = vunpack.c.h.b16 %v63
    %v335 = vunpack.c.l.b16 %v64
    %v336 = vunpack.c.h.b16 %v64
    %v337 = vunpack.c.l.b16 %v65
    %v338 = vunpack.c.h.b16 %v65
    %v339 = vunpack.c.l.b16 %v66
    %v340 = vunpack.c.h.b16 %v66
    %v341 = vunpack.c.l.b16 %v67
    %v342 = vunpack.c.h.b16 %v67
    %v343 = vunpack.c.l.b16 %v68
    %v344 = vunpack.c.h.b16 %v68
    %v345 = vunpack.c.l.b16 %v69
    %v346 = vunpack.c.h.b16 %v69
    %v347 = vunpack.c.l.b16 %v70
    %v348 = vunpack.c.h.b16 %v70
    %v349 = vunpack.c.l.b16 %v71
    %v350 = vunpack.c.h.b16 %v71
    %v351 = vunpack.c.l.b16 %v72
    %v352 = vunpack.c.h.b16 %v72
    %v353 = vunpack.c.l.b16 %v73
    %v354 = vunpack.c.h.b16 %v73
    %v355 = vunpack.c.l.b16 %v74
    %v356 = vunpack.c.h.b16 %v74
    %v357 = vunpack.c.l.b16 %v75
    %v358 = vunpack.c.h.b16 %v75
    %v359 = vunpack.c.l.b16 %v76
    %v360 = vunpack.c.h.b16 %v76
    %v361 = vunpack.c.l.b16 %v77
    %v362 = vunpack.c.h.b16 %v77
    %v363 = vunpack.c.l.b16 %v78
    %v364 = vunpack.c.h.b16 %v78
    %v365 = vunpack.c.l.b16 %v79
    %v366 = vunpack.c.h.b16 %v79
    %v367 = vunpack.c.l.b16 %v80
    %v368 = vunpack.c.h.b16 %v80
    %v369 = vunpack.c.l.b16 %v81
    %v370 = vunpack.c.h.b16 %v81
    %v371 = vunpack.c.l.b16 %v82
    %v372 = vunpack.c.h.b16 %v82
    %v373 = vunpack.c.l.b16 %v83
    %v374 = vunpack.c.h.b16 %v83
    %v375 = vunpack.c.l.b16 %v84
    %v376 = vunpack.c.h.b16 %v84
    %v377 = vunpack.c.l.b16 %v85
    %v378 = vunpack.c.h.b16 %v85
    %v379 = vunpack.c.l.b16 %v86
    %v380 = vunpack.c.h.b16 %v86
    %v381 = vunpack.c.l.b16 %v87
    %v382 = vunpack.c.h.b16 %v87
    %v383 = vunpack.c.l.b16 %v88
    %v384 = vunpack.c.h.b16 %v88
    %v385 = vunpack.c.l.b16 %v89
    %v386 = vunpack.c.h.b16 %v89
    %v387 = vunpack.c.l.b16 %v90
    %v388 = vunpack.c.h.b16 %v90
    %v389 = vunpack.c.l.b16 %v91
    %v390 = vunpack.c.h.b16 %v91
    %v391 = vunpack.c.l.b16 %v92
    %v392 = vunpack.c.h.b16 %v92
    %v393 = vunpack.c.l.b16 %v93
    %v394 = vunpack.c.h.b16 %v93
    %v395 = vunpack.c.l.b16 %v94
    %v396 = vunpack.c.h.b16 %v94
    %v397 = vunpack.c.l.b16 %v95
    %v398 = vunpack.c.h.b16 %v95
    %v399 = vunpack.c.l.b16 %v96
    %v400 = vunpack.c.h.b16 %v96
    %v401 = vunpack.c.l.b16 %v97
    %v402 = vunpack.c.h.b16 %v97
    %v403 = vunpack.c.l.b16 %v98
    %v404 = vunpack.c.h.b16 %v98
    %v405 = vunpack.c.l.b16 %v99
    %v406 = vunpack.c.h.b16 %v99
    %v407 = vunpack.c.l.b16 %v100
    %v408 = vunpack.c.h.b16 %v100
    %v409 = vunpack.c.l.b16 %v101
    %v410 = vunpack.c.h.b16 %v101
    %v411 = vunpack.c.l.b16 %v102
    %v412 = vunpack.c.h.b16 %v102
    %v413 = vunpack.c.l.b16 %v103
    %v414 = vunpack.c.h.b16 %v103
    %v415 = vunpack.c.l.b16 %v104
    %v416 = vunpack.c.h.b16 %v104
    %v417 = vunpack.c.l.b16 %v105
    %v418 = vunpack.c.h.b16 %v105
    %v419 = vunpack.c.l.b16 %v106
    %v420 = vunpack.c.h.b16 %v106
    %v421 = vunpack.c.l.b16 %v107
    %v422 = vunpack.c.h.b16 %v107
    %v423 = vunpack.c.l.b16 %v108
    %v424 = vunpack.c.h.b16 %v108
    %v425 = vunpack.c.l.b16 %v109
    %v426 = vunpack.c.h.b16 %v109
    %v427 = vunpack.c.l.b16 %v110
    %v428 = vunpack.c.h.b16 %v110
    %v429 = vunpack.c.l.b16 %v111
    %v430 = vunpack.c.h.b16 %v111
    %v431 = vunpack.c.l.b16 %v112
    %v432 = vunpack.c.h.b16 %v112
    %v433 = vunpack.c.l.b16 %v113
    %v434 = vunpack.c.h.b16 %v113
    %v435 = vunpack.c.l.b16 %v114
    %v436 = vunpack.c.h.b16 %v114
    %v437 = vunpack.c.l.b16 %v115
    %v438 = vunpack.c.h.b16 %v115
    %v439 = vunpack.c.l.b16 %v116
    %v440 = vunpack.c.h.b16 %v116
    %v441 = vunpack.c.l.b16 %v117
    %v442 = vunpack.c.h.b16 %v117
    %v443 = vunpack.c.l.b16 %v118
    %v444 = vunpack.c.h.b16 %v118
    %v445 = vunpack.c.l.b16 %v119
    %v446 = vunpack.c.h.b16 %v119
    %v447 = vunpack.c.l.b16 %v120
    %v448 = vunpack.c.h.b16 %v120
    %v449 = vunpack.c.l.b16 %v121
    %v450 = vunpack.c.h.b16 %v121
    %v451 = vunpack.c.l.b16 %v122
    %v452 = vunpack.c.h.b16 %v122
    %v453 = vunpack.c.l.b16 %v123
    %v454 = vunpack.c.h.b16 %v123
    %v455 = vunpack.c.l.b16 %v124
    %v456 = vunpack.c.h.b16 %v124
    %v457 = vunpack.c.l.b16 %v125
    %v458 = vunpack.c.h.b16 %v125
    %v459 = vunpack.c.l.b16 %v126
    %v460 = vunpack.c.h.b16 %v126
    %v461 = vunpack.c.l.b16 %v127
    %v462 = vunpack.c.h.b16 %v127
    %v463 = vunpack.c.l.b16 %v128
    %v464 = vunpack.c.h.b16 %v128
    %v465 = vunpack.c.l.b16 %v129
    %v466 = vunpack.c.h.b16 %v129
    %v467 = vunpack.c.l.b16 %v130
    %v468 = vunpack.c.h.b16 %v130
    %v469 = vunpack.c.l.b16 %v131
    %v470 = vunpack.c.h.b16 %v131
    %v471 = vunpack.c.l.b16 %v132
    %v472 = vunpack.c.h.b16 %v132
    %v473 = vunpack.c.l.b16 %v133
    %v474 = vunpack.c.h.b16 %v133
    %v475 = vunpack.c.l.b16 %v134
    %v476 = vunpack.c.h.b16 %v134
    %v477 = vunpack.c.l.b16 %v135
    %v478 = vunpack.c.h.b16 %v135
    %v479 = vunpack.c.l.b16 %v136
    %v480 = vunpack.c.h.b16 %v136
    %v481 = vunpack.c.l.b16 %v137
    %v482 = vunpack.c.h.b16 %v137
    %v483 = vunpack.c.l.b16 %v138
    %v484 = vunpack.c.h.b16 %v138
    %v485 = vunpack.c.l.b16 %v139
    %v486 = vunpack.c.h.b16 %v139
    %v487 = vunpack.c.l.b16 %v140
    %v488 = vunpack.c.h.b16 %v140
    %v489 = vunpack.c.l.b16 %v141
    %v490 = vunpack.c.h.b16 %v141
    %v491 = vunpack.c.l.b16 %v142
    %v492 = vunpack.c.h.b16 %v142
    %v493 = vunpack.c.l.b16 %v143
    %v494 = vunpack.c.h.b16 %v143
    %v495 = vunpack.c.l.b16 %v144
    %v496 = vunpack.c.h.b16 %v144
    %v497 = vunpack.c.l.b16 %v145
    %v498 = vunpack.c.h.b16 %v145
    %v499 = vunpack.c.l.b16 %v146
    %v500 = vunpack.c.h.b16 %v146
    %v501 = vunpack.c.l.b16 %v147
    %v502 = vunpack.c.h.b16 %v147
    %v503 = vunpack.c.l.b16 %v148
    %v504 = vunpack.c.h.b16 %v148
    %v505 = vunpack.c.l.b16 %v149
    %v506 = vunpack.c.h.b16 %v149
    %v507 = vunpack.c.l.b16 %v150
    %v508 = vunpack.c.h.b16 %v150
    %v509 = vunpack.c.l.b16 %v151
    %v510 = vunpack.c.h.b16 %v151
    %v511 = vunpack.c.l.b16 %v152
    %v512 = vunpack.c.h.b16 %v152
    %v513 = vunpack.c.l.b16 %v153
    %v514 = vunpack.c.h.b16 %v153
    %v515 = vunpack.c.l.b16 %v154
    %v516 = vunpack.c.h.b16 %v154
    %v517 = vunpack.c.l.b16 %v155
    %v518 = vunpack.c.h.b16 %v155
    %v519 = vunpack.c.l.b16 %v156
    %v520 = vunpack.c.h.b16 %v156
    %v521 = vunpack.c.l.b16 %v157
    %v522 = vunpack.c.h.b16 %v157
    %v523 = vunpack.c.l.b16 %v158
    %v524 = vunpack.c.h.b16 %v158
    %v525 = vunpack.c.l.b16 %v159
    %v526 = vunpack.c.h.b16 %v159
    %v527 = vunpack.c.l.b16 %v160
    %v528 = vunpack.c.h.b16 %v160
    %v529 = vunpack.c.l.b16 %v161
    %v530 = vunpack.c.h.b16 %v161
    %v531 = vunpack.c.l.b16 %v162
    %v532 = vunpack.c.h.b16 %v162
    %v533 = vunpack.c.l.b16 %v163
    %v534 = vunpack.c.h.b16 %v163
    %v535 = vunpack.c.l.b16 %v164
    %v536 = vunpack.c.h.b16 %v164
    %v537 = vunpack.c.l.b16 %v165
    %v538 = vunpack.c.h.b16 %v165
    %v539 = vunpack.c.l.b16 %v166
    %v540 = vunpack.c.h.b16 %v166
    %v541 = vunpack.c.l.b16 %v167
    %v542 = vunpack.c.h.b16 %v167
    %v543 = vunpack.c.l.b16 %v168
    %v544 = vunpack.c.h.b16 %v168
    %v545 = vunpack.c.l.b16 %v169
    %v546 = vunpack.c.h.b16 %v169
    %v547 = vunpack.c.l.b16 %v170
    %v548 = vunpack.c.h.b16 %v170
    %v549 = vunpack.c.l.b16 %v171
    %v550 = vunpack.c.h.b16 %v171
    %v551 = vunpack.c.l.b16 %v172
    %v552 = vunpack.c.h.b16 %v172
    %v553 = vunpack.c.l.b16 %v173
    %v554 = vunpack.c.h.b16 %v173
    %v555 = vunpack.c.l.b16 %v174
    %v556 = vunpack.c.h.b16 %v174
    %v557 = vunpack.c.l.b16 %v175
    %v558 = vunpack.c.h.b16 %v175
    %v559 = vunpack.c.l.b16 %v176
    %v560 = vunpack.c.h.b16 %v176
    %v561 = vunpack.c.l.b16 %v177
    %v562 = vunpack.c.h.b16 %v177
    %v563 = vunpack.c.l.b16 %v178
    %v564 = vunpack.c.h.b16 %v178
    %v565 = vunpack.c.l.b16 %v179
    %v566 = vunpack.c.h.b16 %v179
    %v567 = vunpack.c.l.b16 %v180
    %v568 = vunpack.c.h.b16 %v180
    %v569 = vunpack.c.l.b16 %v181
    %v570 = vunpack.c.h.b16 %v181
    %v571 = vunpack.c.l.b16 %v182
    %v572 = vunpack.c.h.b16 %v182
    %v573 = vpack.c.b16 %v319, %v317
    %v574 = vpack.c.b16 %v320, %v318
    %v575 = vpack.c.b16 %v323, %v321
    %v576 = vpack.c.b16 %v324, %v322
    %v577 = vpack.c.b16 %v327, %v325
    %v578 = vpack.c.b16 %v328, %v326
    %v579 = vpack.c.b16 %v331, %v329
    %v580 = vpack.c.b16 %v332, %v330
    %v581 = vpack.c.b16 %v335, %v333
    %v582 = vpack.c.b16 %v336, %v334
    %v583 = vpack.c.b16 %v339, %v337
    %v584 = vpack.c.b16 %v340, %v338
    %v585 = vpack.c.b16 %v343, %v341
    %v586 = vpack.c.b16 %v344, %v342
    %v587 = vpack.c.b16 %v347, %v345
    %v588 = vpack.c.b16 %v348, %v346
    %v589 = vpack.c.b16 %v351, %v349
    %v590 = vpack.c.b16 %v352, %v350
    %v591 = vpack.c.b16 %v355, %v353
    %v592 = vpack.c.b16 %v356, %v354
    %v593 = vpack.c.b16 %v359, %v357
    %v594 = vpack.c.b16 %v360, %v358
    %v595 = vpack.c.b16 %v363, %v361
    %v596 = vpack.c.b16 %v364, %v362
    %v597 = vpack.c.b16 %v367, %v365
    %v598 = vpack.c.b16 %v368, %v366
    %v599 = vpack.c.b16 %v371, %v369
    %v600 = vpack.c.b16 %v372, %v370
    %v601 = vpack.c.b16 %v375, %v373
    %v602 = vpack.c.b16 %v376, %v374
    %v603 = vpack.c.b16 %v379, %v377
    %v604 = vpack.c.b16 %v380, %v378
    %v605 = vpack.c.b16 %v383, %v381
    %v606 = vpack.c.b16 %v384, %v382
    %v607 = vpack.c.b16 %v387, %v385
    %v608 = vpack.c.b16 %v388, %v386
    %v609 = vpack.c.b16 %v391, %v389
    %v610 = vpack.c.b16 %v392, %v390
    %v611 = vpack.c.b16 %v395, %v393
    %v612 = vpack.c.b16 %v396, %v394
    %v613 = vpack.c.b16 %v399, %v397
    %v614 = vpack.c.b16 %v400, %v398
    %v615 = vpack.c.b16 %v403, %v401
    %v616 = vpack.c.b16 %v404, %v402
    %v617 = vpack.c.b16 %v407, %v405
    %v618 = vpack.c.b16 %v408, %v406
    %v619 = vpack.c.b16 %v411, %v409
    %v620 = vpack.c.b16 %v412, %v410
    %v621 = vpack.c.b16 %v415, %v413
    %v622 = vpack.c.b16 %v416, %v414
    %v623 = vpack.c.b16 %v419, %v417
    %v624 = vpack.c.b16 %v420, %v418
    %v625 = vpack.c.b16 %v423, %v421
    %v626 = vpack.c.b16 %v424, %v422
    %v627 = vpack.c.b16 %v427, %v425
    %v628 = vpack.c.b16 %v428, %v426
    %v629 = vpack.c.b16 %v431, %v429
    %v630 = vpack.c.b16 %v432, %v430
    %v631 = vpack.c.b16 %v435, %v433
    %v632 = vpack.c.b16 %v436, %v434
    %v633 = vpack.c.b16 %v439, %v437
    %v634 = vpack.c.b16 %v440, %v438
    %v635 = vpack.c.b16 %v443, %v441
    %v636 = vpack.c.b16 %v444, %v442
    %v637 = vpack.c.b16 %v447, %v445
    %v638 = vpack.c.b16 %v448, %v446
    %v639 = vpack.c.b16 %v451, %v449
    %v640 = vpack.c.b16 %v452, %v450
    %v641 = vpack.c.b16 %v455, %v453
    %v642 = vpack.c.b16 %v456, %v454
    %v643 = vpack.c.b16 %v459, %v457
    %v644 = vpack.c.b16 %v460, %v458
    %v645 = vpack.c.b16 %v463, %v461
    %v646 = vpack.c.b16 %v464, %v462
    %v647 = vpack.c.b16 %v467, %v465
    %v648 = vpack.c.b16 %v468, %v466
    %v649 = vpack.c.b16 %v471, %v469
    %v650 = vpack.c.b16 %v472, %v470
    %v651 = vpack.c.b16 %v475, %v473
    %v652 = vpack.c.b16 %v476, %v474
    %v653 = vpack.c.b16 %v479, %v477
    %v654 = vpack.c.b16 %v480, %v478
    %v655 = vpack.c.b16 %v483, %v481
    %v656 = vpack.c.b16 %v484, %v482
    %v657 = vpack.c.b16 %v487, %v485
    %v658 = vpack.c.b16 %v488, %v486
    %v659 = vpack.c.b16 %v491, %v489
    %v660 = vpack.c.b16 %v492, %v490
    %v661 = vpack.c.b16 %v495, %v493
    %v662 = vpack.c.b16 %v496, %v494
    %v663 = vpack.c.b16 %v499, %v497
    %v664 = vpack.c.b16 %v500, %v498
    %v665 = vpack.c.b16 %v503, %v501
    %v666 = vpack.c.b16 %v504, %v502
    %v667 = vpack.c.b16 %v507, %v505
    %v668 = vpack.c.b16 %v508, %v506
    %v669 = vpack.c.b16 %v511, %v509
    %v670 = vpack.c.b16 %v512, %v510
    %v671 = vpack.c.b16 %v515, %v513
    %v672 = vpack.c.b16 %v516, %v514
    %v673 = vpack.c.b16 %v519, %v517
    %v674 = vpack.c.b16 %v520, %v518
    %v675 = vpack.c.b16 %v523, %v521
    %v676 = vpack.c.b16 %v524, %v522
    %v677 = vpack.c.b16 %v527, %v525
    %v678 = vpack.c.b16 %v528, %v526
    %v679 = vpack.c.b16 %v531, %v529
    %v680 = vpack.c.b16 %v532, %v530
    %v681 = vpack.c.b16 %v535, %v533
    %v682 = vpack.c.b16 %v536, %v534
    %v683 = vpack.c.b16 %v539, %v537
    %v684 = vpack.c.b16 %v540, %v538
    %v685 = vpack.c.b16 %v543, %v541
    %v686 = vpack.c.b16 %v544, %v542
    %v687 = vpack.c.b16 %v547, %v545
    %v688 = vpack.c.b16 %v548, %v546
    %v689 = vpack.c.b16 %v551, %v549
    %v690 = vpack.c.b16 %v552, %v550
    %v691 = vpack.c.b16 %v555, %v553
    %v692 = vpack.c.b16 %v556, %v554
    %v693 = vpack.c.b16 %v559, %v557
    %v694 = vpack.c.b16 %v560, %v558
    %v695 = vpack.c.b16 %v563, %v561
    %v696 = vpack.c.b16 %v564, %v562
    %v697 = vpack.c.b16 %v567, %v565
    %v698 = vpack.c.b16 %v568, %v566
    %v699 = vpack.c.b16 %v571, %v569
    %v700 = vpack.c.b16 %v572, %v570
    %829 = vmatpush.bf16.msra.mxu0 %v587
    %830 = vmatpush.bf16.msra.mxu0 %v585
    %831 = vmatpush.bf16.msra.mxu0 %v583
    %832 = vmatpush.bf16.msra.mxu0 %v581
    %833 = vmatpush.bf16.msra.mxu0 %v579
    %834 = vmatpush.bf16.msra.mxu0 %v577
    %835 = vmatpush.bf16.msra.mxu0 %v575
    %836 = vmatpush.bf16.msra.mxu0 %v573
    %837 = vmatmul.bf16.gmra.mxu0 %v47
    %v838 = vpop.f32.mrf.mxu0
    %v839 = vadd.f32 %v185, %v838
    %v840 = vpop.f32.mrf.mxu0
    %841 = vdwg.mxu0
    %842 = vmatpush.bf16.msra.mxu0 %v603
    %843 = vmatpush.bf16.msra.mxu0 %v601
    %844 = vmatpush.bf16.msra.mxu0 %v599
    %845 = vmatpush.bf16.msra.mxu0 %v597
    %846 = vmatpush.bf16.msra.mxu0 %v595
    %847 = vmatpush.bf16.msra.mxu0 %v593
    %848 = vmatpush.bf16.msra.mxu0 %v591
    %849 = vmatpush.bf16.msra.mxu0 %v589
    %850 = vmatmul.bf16.gmra.mxu0 %v48
    %v851 = vpop.f32.mrf.mxu0
    %v852 = vadd.f32 %v839, %v851
    %v853 = vpop.f32.mrf.mxu0
    %854 = vdwg.mxu0
    %855 = vmatpush.bf16.msra.mxu0 %v619
    %856 = vmatpush.bf16.msra.mxu0 %v617
    %857 = vmatpush.bf16.msra.mxu0 %v615
    %858 = vmatpush.bf16.msra.mxu0 %v613
    %859 = vmatpush.bf16.msra.mxu0 %v611
    %860 = vmatpush.bf16.msra.mxu0 %v609
    %861 = vmatpush.bf16.msra.mxu0 %v607
    %862 = vmatpush.bf16.msra.mxu0 %v605
    %863 = vmatmul.bf16.gmra.mxu0 %v49
    %v864 = vpop.f32.mrf.mxu0
    %v865 = vadd.f32 %v852, %v864
    %v866 = vpop.f32.mrf.mxu0
    %867 = vdwg.mxu0
    %868 = vmatpush.bf16.msra.mxu0 %v635
    %869 = vmatpush.bf16.msra.mxu0 %v633
    %870 = vmatpush.bf16.msra.mxu0 %v631
    %871 = vmatpush.bf16.msra.mxu0 %v629
    %872 = vmatpush.bf16.msra.mxu0 %v627
    %873 = vmatpush.bf16.msra.mxu0 %v625
    %874 = vmatpush.bf16.msra.mxu0 %v623
    %875 = vmatpush.bf16.msra.mxu0 %v621
    %876 = vmatmul.bf16.gmra.mxu0 %v50
    %v877 = vpop.f32.mrf.mxu0
    %v878 = vadd.f32 %v865, %v877
    %v879 = vpop.f32.mrf.mxu0
    %880 = vdwg.mxu0
    %881 = vmatpush.bf16.msra.mxu0 %v651
    %882 = vmatpush.bf16.msra.mxu0 %v649
    %883 = vmatpush.bf16.msra.mxu0 %v647
    %884 = vmatpush.bf16.msra.mxu0 %v645
    %885 = vmatpush.bf16.msra.mxu0 %v643
    %886 = vmatpush.bf16.msra.mxu0 %v641
    %887 = vmatpush.bf16.msra.mxu0 %v639
    %888 = vmatpush.bf16.msra.mxu0 %v637
    %889 = vmatmul.bf16.gmra.mxu0 %v51
    %v890 = vpop.f32.mrf.mxu0
    %v891 = vadd.f32 %v878, %v890
    %v892 = vpop.f32.mrf.mxu0
    %893 = vdwg.mxu0
    %894 = vmatpush.bf16.msra.mxu0 %v667
    %895 = vmatpush.bf16.msra.mxu0 %v665
    %896 = vmatpush.bf16.msra.mxu0 %v663
    %897 = vmatpush.bf16.msra.mxu0 %v661
    %898 = vmatpush.bf16.msra.mxu0 %v659
    %899 = vmatpush.bf16.msra.mxu0 %v657
    %900 = vmatpush.bf16.msra.mxu0 %v655
    %901 = vmatpush.bf16.msra.mxu0 %v653
    %902 = vmatmul.bf16.gmra.mxu0 %v52
    %v903 = vpop.f32.mrf.mxu0
    %v904 = vadd.f32 %v891, %v903
    %v905 = vpop.f32.mrf.mxu0
    %906 = vdwg.mxu0
    %907 = vmatpush.bf16.msra.mxu0 %v683
    %908 = vmatpush.bf16.msra.mxu0 %v681
    %909 = vmatpush.bf16.msra.mxu0 %v679
    %910 = vmatpush.bf16.msra.mxu0 %v677
    %911 = vmatpush.bf16.msra.mxu0 %v675
    %912 = vmatpush.bf16.msra.mxu0 %v673
    %913 = vmatpush.bf16.msra.mxu0 %v671
    %914 = vmatpush.bf16.msra.mxu0 %v669
    %915 = vmatmul.bf16.gmra.mxu0 %v53
    %v916 = vpop.f32.mrf.mxu0
    %v917 = vadd.f32 %v904, %v916
    %v918 = vpop.f32.mrf.mxu0
    %919 = vdwg.mxu0
    %920 = vmatpush.bf16.msra.mxu0 %v699
    %921 = vmatpush.bf16.msra.mxu0 %v697
    %922 = vmatpush.bf16.msra.mxu0 %v695
    %923 = vmatpush.bf16.msra.mxu0 %v693
    %924 = vmatpush.bf16.msra.mxu0 %v691
    %925 = vmatpush.bf16.msra.mxu0 %v689
    %926 = vmatpush.bf16.msra.mxu0 %v687
    %927 = vmatpush.bf16.msra.mxu0 %v685
    %928 = vmatmul.bf16.gmra.mxu0 %v54
    %v929 = vpop.f32.mrf.mxu0
    %v930 = vadd.f32 %v917, %v929
    %v931 = vpop.f32.mrf.mxu0
    %932 = vdwg.mxu0
    %933 = vmatpush.bf16.msra.mxu0 %v588
    %934 = vmatpush.bf16.msra.mxu0 %v586
    %935 = vmatpush.bf16.msra.mxu0 %v584
    %936 = vmatpush.bf16.msra.mxu0 %v582
    %937 = vmatpush.bf16.msra.mxu0 %v580
    %938 = vmatpush.bf16.msra.mxu0 %v578
    %939 = vmatpush.bf16.msra.mxu0 %v576
    %940 = vmatpush.bf16.msra.mxu0 %v574
    %941 = vmatmul.bf16.gmra.mxu0 %v47
    %v942 = vpop.f32.mrf.mxu0
    %v943 = vadd.f32 %v186, %v942
    %v944 = vpop.f32.mrf.mxu0
    %945 = vdwg.mxu0
    %946 = vmatpush.bf16.msra.mxu0 %v604
    %947 = vmatpush.bf16.msra.mxu0 %v602
    %948 = vmatpush.bf16.msra.mxu0 %v600
    %949 = vmatpush.bf16.msra.mxu0 %v598
    %950 = vmatpush.bf16.msra.mxu0 %v596
    %951 = vmatpush.bf16.msra.mxu0 %v594
    %952 = vmatpush.bf16.msra.mxu0 %v592
    %953 = vmatpush.bf16.msra.mxu0 %v590
    %954 = vmatmul.bf16.gmra.mxu0 %v48
    %v955 = vpop.f32.mrf.mxu0
    %v956 = vadd.f32 %v943, %v955
    %v957 = vpop.f32.mrf.mxu0
    %958 = vdwg.mxu0
    %959 = vmatpush.bf16.msra.mxu0 %v620
    %960 = vmatpush.bf16.msra.mxu0 %v618
    %961 = vmatpush.bf16.msra.mxu0 %v616
    %962 = vmatpush.bf16.msra.mxu0 %v614
    %963 = vmatpush.bf16.msra.mxu0 %v612
    %964 = vmatpush.bf16.msra.mxu0 %v610
    %965 = vmatpush.bf16.msra.mxu0 %v608
    %966 = vmatpush.bf16.msra.mxu0 %v606
    %967 = vmatmul.bf16.gmra.mxu0 %v49
    %v968 = vpop.f32.mrf.mxu0
    %v969 = vadd.f32 %v956, %v968
    %v970 = vpop.f32.mrf.mxu0
    %971 = vdwg.mxu0
    %972 = vmatpush.bf16.msra.mxu0 %v636
    %973 = vmatpush.bf16.msra.mxu0 %v634
    %974 = vmatpush.bf16.msra.mxu0 %v632
    %975 = vmatpush.bf16.msra.mxu0 %v630
    %976 = vmatpush.bf16.msra.mxu0 %v628
    %977 = vmatpush.bf16.msra.mxu0 %v626
    %978 = vmatpush.bf16.msra.mxu0 %v624
    %979 = vmatpush.bf16.msra.mxu0 %v622
    %980 = vmatmul.bf16.gmra.mxu0 %v50
    %v981 = vpop.f32.mrf.mxu0
    %v982 = vadd.f32 %v969, %v981
    %v983 = vpop.f32.mrf.mxu0
    %984 = vdwg.mxu0
    %985 = vmatpush.bf16.msra.mxu0 %v652
    %986 = vmatpush.bf16.msra.mxu0 %v650
    %987 = vmatpush.bf16.msra.mxu0 %v648
    %988 = vmatpush.bf16.msra.mxu0 %v646
    %989 = vmatpush.bf16.msra.mxu0 %v644
    %990 = vmatpush.bf16.msra.mxu0 %v642
    %991 = vmatpush.bf16.msra.mxu0 %v640
    %992 = vmatpush.bf16.msra.mxu0 %v638
    %993 = vmatmul.bf16.gmra.mxu0 %v51
    %v994 = vpop.f32.mrf.mxu0
    %v995 = vadd.f32 %v982, %v994
    %v996 = vpop.f32.mrf.mxu0
    %997 = vdwg.mxu0
    %998 = vmatpush.bf16.msra.mxu0 %v668
    %999 = vmatpush.bf16.msra.mxu0 %v666
    %1000 = vmatpush.bf16.msra.mxu0 %v664
    %1001 = vmatpush.bf16.msra.mxu0 %v662
    %1002 = vmatpush.bf16.msra.mxu0 %v660
    %1003 = vmatpush.bf16.msra.mxu0 %v658
    %1004 = vmatpush.bf16.msra.mxu0 %v656
    %1005 = vmatpush.bf16.msra.mxu0 %v654
    %1006 = vmatmul.bf16.gmra.mxu0 %v52
    %v1007 = vpop.f32.mrf.mxu0
    %v1008 = vadd.f32 %v995, %v1007
    %v1009 = vpop.f32.mrf.mxu0
    %1010 = vdwg.mxu0
    %1011 = vmatpush.bf16.msra.mxu0 %v684
    %1012 = vmatpush.bf16.msra.mxu0 %v682
    %1013 = vmatpush.bf16.msra.mxu0 %v680
    %1014 = vmatpush.bf16.msra.mxu0 %v678
    %1015 = vmatpush.bf16.msra.mxu0 %v676
    %1016 = vmatpush.bf16.msra.mxu0 %v674
    %1017 = vmatpush.bf16.msra.mxu0 %v672
    %1018 = vmatpush.bf16.msra.mxu0 %v670
    %1019 = vmatmul.bf16.gmra.mxu0 %v53
    %v1020 = vpop.f32.mrf.mxu0
    %v1021 = vadd.f32 %v1008, %v1020
    %v1022 = vpop.f32.mrf.mxu0
    %1023 = vdwg.mxu0
    %1024 = vmatpush.bf16.msra.mxu0 %v700
    %1025 = vmatpush.bf16.msra.mxu0 %v698
    %1026 = vmatpush.bf16.msra.mxu0 %v696
    %1027 = vmatpush.bf16.msra.mxu0 %v694
    %1028 = vmatpush.bf16.msra.mxu0 %v692
    %1029 = vmatpush.bf16.msra.mxu0 %v690
    %1030 = vmatpush.bf16.msra.mxu0 %v688
    %1031 = vmatpush.bf16.msra.mxu0 %v686
    %1032 = vmatmul.bf16.gmra.mxu0 %v54
    %v1033 = vpop.f32.mrf.mxu0
    %v1034 = vadd.f32 %v1021, %v1033
    %v1035 = vpop.f32.mrf.mxu0
    %1036 = vdwg.mxu0
    %v1039 = vrot.slane %v1034, 6
    %vm1040 = vcmask 1041408
    %v1041 = vsel %vm1040, %v930, %v1039
    %1043 = vst [vmem:[#allocation2] sm:$0xf] %v1041
    %v1044 = vpack.c.bf16 %v930, %v930
    %v1045 = vpack.c.bf16 %v1034, %v1034
    %v1046 = vld [vmem:[%s3] sm:$0xff]
    %v1047 = vld [vmem:[%s3 + $0x8] sm:$0xff]
    %v1048 = vld [vmem:[%s3 + $0x10] sm:$0xff]
    %v1049 = vld [vmem:[%s3 + $0x18] sm:$0xff]
    %v1050 = vld [vmem:[%s3 + $0x20] sm:$0xff]
    %v1051 = vld [vmem:[%s3 + $0x28] sm:$0xff]
    %v1052 = vld [vmem:[%s3 + $0x30] sm:$0xff]
    %v1053 = vld [vmem:[%s3 + $0x38] sm:$0xff]
    %v1054 = vld [vmem:[%s3 + $0x40] sm:$0xff]
    %v1055 = vld [vmem:[%s3 + $0x48] sm:$0xff]
    %v1056 = vld [vmem:[%s3 + $0x50] sm:$0xff]
    %v1057 = vld [vmem:[%s3 + $0x58] sm:$0xff]
    %v1058 = vld [vmem:[%s3 + $0x60] sm:$0xff]
    %v1059 = vld [vmem:[%s3 + $0x68] sm:$0xff]
    %v1060 = vld [vmem:[%s3 + $0x70] sm:$0xff]
    %v1061 = vld [vmem:[%s3 + $0x78] sm:$0xff]
    %v1062 = vld [vmem:[%s3 + $0x80] sm:$0xff]
    %v1063 = vld [vmem:[%s3 + $0x88] sm:$0xff]
    %v1064 = vld [vmem:[%s3 + $0x90] sm:$0xff]
    %v1065 = vld [vmem:[%s3 + $0x98] sm:$0xff]
    %v1066 = vld [vmem:[%s3 + $0xa0] sm:$0xff]
    %v1067 = vld [vmem:[%s3 + $0xa8] sm:$0xff]
    %v1068 = vld [vmem:[%s3 + $0xb0] sm:$0xff]
    %v1069 = vld [vmem:[%s3 + $0xb8] sm:$0xff]
    %v1070 = vld [vmem:[%s3 + $0xc0] sm:$0xff]
    %v1071 = vld [vmem:[%s3 + $0xc8] sm:$0xff]
    %v1072 = vld [vmem:[%s3 + $0xd0] sm:$0xff]
    %v1073 = vld [vmem:[%s3 + $0xd8] sm:$0xff]
    %v1074 = vld [vmem:[%s3 + $0xe0] sm:$0xff]
    %v1075 = vld [vmem:[%s3 + $0xe8] sm:$0xff]
    %v1076 = vld [vmem:[%s3 + $0xf0] sm:$0xff]
    %v1077 = vld [vmem:[%s3 + $0xf8] sm:$0xff]
    %v1078 = vld [vmem:[%s3 + $0x100] sm:$0xff]
    %v1079 = vld [vmem:[%s3 + $0x108] sm:$0xff]
    %v1080 = vld [vmem:[%s3 + $0x110] sm:$0xff]
    %v1081 = vld [vmem:[%s3 + $0x118] sm:$0xff]
    %v1082 = vld [vmem:[%s3 + $0x120] sm:$0xff]
    %v1083 = vld [vmem:[%s3 + $0x128] sm:$0xff]
    %v1084 = vld [vmem:[%s3 + $0x130] sm:$0xff]
    %v1085 = vld [vmem:[%s3 + $0x138] sm:$0xff]
    %v1086 = vld [vmem:[%s3 + $0x140] sm:$0xff]
    %v1087 = vld [vmem:[%s3 + $0x148] sm:$0xff]
    %v1088 = vld [vmem:[%s3 + $0x150] sm:$0xff]
    %v1089 = vld [vmem:[%s3 + $0x158] sm:$0xff]
    %v1090 = vld [vmem:[%s3 + $0x160] sm:$0xff]
    %v1091 = vld [vmem:[%s3 + $0x168] sm:$0xff]
    %v1092 = vld [vmem:[%s3 + $0x170] sm:$0xff]
    %v1093 = vld [vmem:[%s3 + $0x178] sm:$0xff]
    %v1094 = vld [vmem:[%s3 + $0x180] sm:$0xff]
    %v1095 = vld [vmem:[%s3 + $0x188] sm:$0xff]
    %v1096 = vld [vmem:[%s3 + $0x190] sm:$0xff]
    %v1097 = vld [vmem:[%s3 + $0x198] sm:$0xff]
    %v1098 = vld [vmem:[%s3 + $0x1a0] sm:$0xff]
    %v1099 = vld [vmem:[%s3 + $0x1a8] sm:$0xff]
    %v1100 = vld [vmem:[%s3 + $0x1b0] sm:$0xff]
    %v1101 = vld [vmem:[%s3 + $0x1b8] sm:$0xff]
    %v1102 = vld [vmem:[%s3 + $0x1c0] sm:$0xff]
    %v1103 = vld [vmem:[%s3 + $0x1c8] sm:$0xff]
    %v1104 = vld [vmem:[%s3 + $0x1d0] sm:$0xff]
    %v1105 = vld [vmem:[%s3 + $0x1d8] sm:$0xff]
    %v1106 = vld [vmem:[%s3 + $0x1e0] sm:$0xff]
    %v1107 = vld [vmem:[%s3 + $0x1e8] sm:$0xff]
    %v1108 = vld [vmem:[%s3 + $0x1f0] sm:$0xff]
    %v1109 = vld [vmem:[%s3 + $0x1f8] sm:$0xff]
    %v1110 = vld [vmem:[%s3 + $0x200] sm:$0xff]
    %v1111 = vld [vmem:[%s3 + $0x208] sm:$0xff]
    %v1112 = vld [vmem:[%s3 + $0x210] sm:$0xff]
    %v1113 = vld [vmem:[%s3 + $0x218] sm:$0xff]
    %v1114 = vld [vmem:[%s3 + $0x220] sm:$0xff]
    %v1115 = vld [vmem:[%s3 + $0x228] sm:$0xff]
    %v1116 = vld [vmem:[%s3 + $0x230] sm:$0xff]
    %v1117 = vld [vmem:[%s3 + $0x238] sm:$0xff]
    %v1118 = vld [vmem:[%s3 + $0x240] sm:$0xff]
    %v1119 = vld [vmem:[%s3 + $0x248] sm:$0xff]
    %v1120 = vld [vmem:[%s3 + $0x250] sm:$0xff]
    %v1121 = vld [vmem:[%s3 + $0x258] sm:$0xff]
    %v1122 = vld [vmem:[%s3 + $0x260] sm:$0xff]
    %v1123 = vld [vmem:[%s3 + $0x268] sm:$0xff]
    %v1124 = vld [vmem:[%s3 + $0x270] sm:$0xff]
    %v1125 = vld [vmem:[%s3 + $0x278] sm:$0xff]
    %v1126 = vld [vmem:[%s3 + $0x280] sm:$0xff]
    %v1127 = vld [vmem:[%s3 + $0x288] sm:$0xff]
    %v1128 = vld [vmem:[%s3 + $0x290] sm:$0xff]
    %v1129 = vld [vmem:[%s3 + $0x298] sm:$0xff]
    %v1130 = vld [vmem:[%s3 + $0x2a0] sm:$0xff]
    %v1131 = vld [vmem:[%s3 + $0x2a8] sm:$0xff]
    %v1132 = vld [vmem:[%s3 + $0x2b0] sm:$0xff]
    %v1133 = vld [vmem:[%s3 + $0x2b8] sm:$0xff]
    %v1134 = vld [vmem:[%s3 + $0x2c0] sm:$0xff]
    %v1135 = vld [vmem:[%s3 + $0x2c8] sm:$0xff]
    %v1136 = vld [vmem:[%s3 + $0x2d0] sm:$0xff]
    %v1137 = vld [vmem:[%s3 + $0x2d8] sm:$0xff]
    %v1138 = vld [vmem:[%s3 + $0x2e0] sm:$0xff]
    %v1139 = vld [vmem:[%s3 + $0x2e8] sm:$0xff]
    %v1140 = vld [vmem:[%s3 + $0x2f0] sm:$0xff]
    %v1141 = vld [vmem:[%s3 + $0x2f8] sm:$0xff]
    %v1142 = vld [vmem:[%s3 + $0x300] sm:$0xff]
    %v1143 = vld [vmem:[%s3 + $0x308] sm:$0xff]
    %v1144 = vld [vmem:[%s3 + $0x310] sm:$0xff]
    %v1145 = vld [vmem:[%s3 + $0x318] sm:$0xff]
    %v1146 = vld [vmem:[%s3 + $0x320] sm:$0xff]
    %v1147 = vld [vmem:[%s3 + $0x328] sm:$0xff]
    %v1148 = vld [vmem:[%s3 + $0x330] sm:$0xff]
    %v1149 = vld [vmem:[%s3 + $0x338] sm:$0xff]
    %v1150 = vld [vmem:[%s3 + $0x340] sm:$0xff]
    %v1151 = vld [vmem:[%s3 + $0x348] sm:$0xff]
    %v1152 = vld [vmem:[%s3 + $0x350] sm:$0xff]
    %v1153 = vld [vmem:[%s3 + $0x358] sm:$0xff]
    %v1154 = vld [vmem:[%s3 + $0x360] sm:$0xff]
    %v1155 = vld [vmem:[%s3 + $0x368] sm:$0xff]
    %v1156 = vld [vmem:[%s3 + $0x370] sm:$0xff]
    %v1157 = vld [vmem:[%s3 + $0x378] sm:$0xff]
    %v1158 = vld [vmem:[%s3 + $0x380] sm:$0xff]
    %v1159 = vld [vmem:[%s3 + $0x388] sm:$0xff]
    %v1160 = vld [vmem:[%s3 + $0x390] sm:$0xff]
    %v1161 = vld [vmem:[%s3 + $0x398] sm:$0xff]
    %v1162 = vld [vmem:[%s3 + $0x3a0] sm:$0xff]
    %v1163 = vld [vmem:[%s3 + $0x3a8] sm:$0xff]
    %v1164 = vld [vmem:[%s3 + $0x3b0] sm:$0xff]
    %v1165 = vld [vmem:[%s3 + $0x3b8] sm:$0xff]
    %v1166 = vld [vmem:[%s3 + $0x3c0] sm:$0xff]
    %v1167 = vld [vmem:[%s3 + $0x3c8] sm:$0xff]
    %v1168 = vld [vmem:[%s3 + $0x3d0] sm:$0xff]
    %v1169 = vld [vmem:[%s3 + $0x3d8] sm:$0xff]
    %v1170 = vld [vmem:[%s3 + $0x3e0] sm:$0xff]
    %v1171 = vld [vmem:[%s3 + $0x3e8] sm:$0xff]
    %v1172 = vld [vmem:[%s3 + $0x3f0] sm:$0xff]
    %v1173 = vld [vmem:[%s3 + $0x3f8] sm:$0xff]
    %v1174 = vld [vmem:[%s4] sm:$0xff]
    %v1176 = vperm.slane %v1174, 0
    %v1177 = vperm.slane %v1174, 1
    %v1178 = vperm.slane %v1174, 2
    %v1179 = vperm.slane %v1174, 3
    %v1180 = vperm.slane %v1174, 4
    %v1181 = vperm.slane %v1174, 5
    %v1182 = vperm.slane %v1174, 6
    %v1183 = vperm.slane %v1174, 7
    %v1320 = vunpack.c.l.b16 %v1046
    %v1321 = vunpack.c.h.b16 %v1046
    %v1322 = vunpack.c.l.b16 %v1047
    %v1323 = vunpack.c.h.b16 %v1047
    %v1324 = vunpack.c.l.b16 %v1048
    %v1325 = vunpack.c.h.b16 %v1048
    %v1326 = vunpack.c.l.b16 %v1049
    %v1327 = vunpack.c.h.b16 %v1049
    %v1328 = vunpack.c.l.b16 %v1050
    %v1329 = vunpack.c.h.b16 %v1050
    %v1330 = vunpack.c.l.b16 %v1051
    %v1331 = vunpack.c.h.b16 %v1051
    %v1332 = vunpack.c.l.b16 %v1052
    %v1333 = vunpack.c.h.b16 %v1052
    %v1334 = vunpack.c.l.b16 %v1053
    %v1335 = vunpack.c.h.b16 %v1053
    %v1336 = vunpack.c.l.b16 %v1054
    %v1337 = vunpack.c.h.b16 %v1054
    %v1338 = vunpack.c.l.b16 %v1055
    %v1339 = vunpack.c.h.b16 %v1055
    %v1340 = vunpack.c.l.b16 %v1056
    %v1341 = vunpack.c.h.b16 %v1056
    %v1342 = vunpack.c.l.b16 %v1057
    %v1343 = vunpack.c.h.b16 %v1057
    %v1344 = vunpack.c.l.b16 %v1058
    %v1345 = vunpack.c.h.b16 %v1058
    %v1346 = vunpack.c.l.b16 %v1059
    %v1347 = vunpack.c.h.b16 %v1059
    %v1348 = vunpack.c.l.b16 %v1060
    %v1349 = vunpack.c.h.b16 %v1060
    %v1350 = vunpack.c.l.b16 %v1061
    %v1351 = vunpack.c.h.b16 %v1061
    %v1352 = vunpack.c.l.b16 %v1062
    %v1353 = vunpack.c.h.b16 %v1062
    %v1354 = vunpack.c.l.b16 %v1063
    %v1355 = vunpack.c.h.b16 %v1063
    %v1356 = vunpack.c.l.b16 %v1064
    %v1357 = vunpack.c.h.b16 %v1064
    %v1358 = vunpack.c.l.b16 %v1065
    %v1359 = vunpack.c.h.b16 %v1065
    %v1360 = vunpack.c.l.b16 %v1066
    %v1361 = vunpack.c.h.b16 %v1066
    %v1362 = vunpack.c.l.b16 %v1067
    %v1363 = vunpack.c.h.b16 %v1067
    %v1364 = vunpack.c.l.b16 %v1068
    %v1365 = vunpack.c.h.b16 %v1068
    %v1366 = vunpack.c.l.b16 %v1069
    %v1367 = vunpack.c.h.b16 %v1069
    %v1368 = vunpack.c.l.b16 %v1070
    %v1369 = vunpack.c.h.b16 %v1070
    %v1370 = vunpack.c.l.b16 %v1071
    %v1371 = vunpack.c.h.b16 %v1071
    %v1372 = vunpack.c.l.b16 %v1072
    %v1373 = vunpack.c.h.b16 %v1072
    %v1374 = vunpack.c.l.b16 %v1073
    %v1375 = vunpack.c.h.b16 %v1073
    %v1376 = vunpack.c.l.b16 %v1074
    %v1377 = vunpack.c.h.b16 %v1074
    %v1378 = vunpack.c.l.b16 %v1075
    %v1379 = vunpack.c.h.b16 %v1075
    %v1380 = vunpack.c.l.b16 %v1076
    %v1381 = vunpack.c.h.b16 %v1076
    %v1382 = vunpack.c.l.b16 %v1077
    %v1383 = vunpack.c.h.b16 %v1077
    %v1384 = vunpack.c.l.b16 %v1078
    %v1385 = vunpack.c.h.b16 %v1078
    %v1386 = vunpack.c.l.b16 %v1079
    %v1387 = vunpack.c.h.b16 %v1079
    %v1388 = vunpack.c.l.b16 %v1080
    %v1389 = vunpack.c.h.b16 %v1080
    %v1390 = vunpack.c.l.b16 %v1081
    %v1391 = vunpack.c.h.b16 %v1081
    %v1392 = vunpack.c.l.b16 %v1082
    %v1393 = vunpack.c.h.b16 %v1082
    %v1394 = vunpack.c.l.b16 %v1083
    %v1395 = vunpack.c.h.b16 %v1083
    %v1396 = vunpack.c.l.b16 %v1084
    %v1397 = vunpack.c.h.b16 %v1084
    %v1398 = vunpack.c.l.b16 %v1085
    %v1399 = vunpack.c.h.b16 %v1085
    %v1400 = vunpack.c.l.b16 %v1086
    %v1401 = vunpack.c.h.b16 %v1086
    %v1402 = vunpack.c.l.b16 %v1087
    %v1403 = vunpack.c.h.b16 %v1087
    %v1404 = vunpack.c.l.b16 %v1088
    %v1405 = vunpack.c.h.b16 %v1088
    %v1406 = vunpack.c.l.b16 %v1089
    %v1407 = vunpack.c.h.b16 %v1089
    %v1408 = vunpack.c.l.b16 %v1090
    %v1409 = vunpack.c.h.b16 %v1090
    %v1410 = vunpack.c.l.b16 %v1091
    %v1411 = vunpack.c.h.b16 %v1091
    %v1412 = vunpack.c.l.b16 %v1092
    %v1413 = vunpack.c.h.b16 %v1092
    %v1414 = vunpack.c.l.b16 %v1093
    %v1415 = vunpack.c.h.b16 %v1093
    %v1416 = vunpack.c.l.b16 %v1094
    %v1417 = vunpack.c.h.b16 %v1094
    %v1418 = vunpack.c.l.b16 %v1095
    %v1419 = vunpack.c.h.b16 %v1095
    %v1420 = vunpack.c.l.b16 %v1096
    %v1421 = vunpack.c.h.b16 %v1096
    %v1422 = vunpack.c.l.b16 %v1097
    %v1423 = vunpack.c.h.b16 %v1097
    %v1424 = vunpack.c.l.b16 %v1098
    %v1425 = vunpack.c.h.b16 %v1098
    %v1426 = vunpack.c.l.b16 %v1099
    %v1427 = vunpack.c.h.b16 %v1099
    %v1428 = vunpack.c.l.b16 %v1100
    %v1429 = vunpack.c.h.b16 %v1100
    %v1430 = vunpack.c.l.b16 %v1101
    %v1431 = vunpack.c.h.b16 %v1101
    %v1432 = vunpack.c.l.b16 %v1102
    %v1433 = vunpack.c.h.b16 %v1102
    %v1434 = vunpack.c.l.b16 %v1103
    %v1435 = vunpack.c.h.b16 %v1103
    %v1436 = vunpack.c.l.b16 %v1104
    %v1437 = vunpack.c.h.b16 %v1104
    %v1438 = vunpack.c.l.b16 %v1105
    %v1439 = vunpack.c.h.b16 %v1105
    %v1440 = vunpack.c.l.b16 %v1106
    %v1441 = vunpack.c.h.b16 %v1106
    %v1442 = vunpack.c.l.b16 %v1107
    %v1443 = vunpack.c.h.b16 %v1107
    %v1444 = vunpack.c.l.b16 %v1108
    %v1445 = vunpack.c.h.b16 %v1108
    %v1446 = vunpack.c.l.b16 %v1109
    %v1447 = vunpack.c.h.b16 %v1109
    %v1448 = vunpack.c.l.b16 %v1110
    %v1449 = vunpack.c.h.b16 %v1110
    %v1450 = vunpack.c.l.b16 %v1111
    %v1451 = vunpack.c.h.b16 %v1111
    %v1452 = vunpack.c.l.b16 %v1112
    %v1453 = vunpack.c.h.b16 %v1112
    %v1454 = vunpack.c.l.b16 %v1113
    %v1455 = vunpack.c.h.b16 %v1113
    %v1456 = vunpack.c.l.b16 %v1114
    %v1457 = vunpack.c.h.b16 %v1114
    %v1458 = vunpack.c.l.b16 %v1115
    %v1459 = vunpack.c.h.b16 %v1115
    %v1460 = vunpack.c.l.b16 %v1116
    %v1461 = vunpack.c.h.b16 %v1116
    %v1462 = vunpack.c.l.b16 %v1117
    %v1463 = vunpack.c.h.b16 %v1117
    %v1464 = vunpack.c.l.b16 %v1118
    %v1465 = vunpack.c.h.b16 %v1118
    %v1466 = vunpack.c.l.b16 %v1119
    %v1467 = vunpack.c.h.b16 %v1119
    %v1468 = vunpack.c.l.b16 %v1120
    %v1469 = vunpack.c.h.b16 %v1120
    %v1470 = vunpack.c.l.b16 %v1121
    %v1471 = vunpack.c.h.b16 %v1121
    %v1472 = vunpack.c.l.b16 %v1122
    %v1473 = vunpack.c.h.b16 %v1122
    %v1474 = vunpack.c.l.b16 %v1123
    %v1475 = vunpack.c.h.b16 %v1123
    %v1476 = vunpack.c.l.b16 %v1124
    %v1477 = vunpack.c.h.b16 %v1124
    %v1478 = vunpack.c.l.b16 %v1125
    %v1479 = vunpack.c.h.b16 %v1125
    %v1480 = vunpack.c.l.b16 %v1126
    %v1481 = vunpack.c.h.b16 %v1126
    %v1482 = vunpack.c.l.b16 %v1127
    %v1483 = vunpack.c.h.b16 %v1127
    %v1484 = vunpack.c.l.b16 %v1128
    %v1485 = vunpack.c.h.b16 %v1128
    %v1486 = vunpack.c.l.b16 %v1129
    %v1487 = vunpack.c.h.b16 %v1129
    %v1488 = vunpack.c.l.b16 %v1130
    %v1489 = vunpack.c.h.b16 %v1130
    %v1490 = vunpack.c.l.b16 %v1131
    %v1491 = vunpack.c.h.b16 %v1131
    %v1492 = vunpack.c.l.b16 %v1132
    %v1493 = vunpack.c.h.b16 %v1132
    %v1494 = vunpack.c.l.b16 %v1133
    %v1495 = vunpack.c.h.b16 %v1133
    %v1496 = vunpack.c.l.b16 %v1134
    %v1497 = vunpack.c.h.b16 %v1134
    %v1498 = vunpack.c.l.b16 %v1135
    %v1499 = vunpack.c.h.b16 %v1135
    %v1500 = vunpack.c.l.b16 %v1136
    %v1501 = vunpack.c.h.b16 %v1136
    %v1502 = vunpack.c.l.b16 %v1137
    %v1503 = vunpack.c.h.b16 %v1137
    %v1504 = vunpack.c.l.b16 %v1138
    %v1505 = vunpack.c.h.b16 %v1138
    %v1506 = vunpack.c.l.b16 %v1139
    %v1507 = vunpack.c.h.b16 %v1139
    %v1508 = vunpack.c.l.b16 %v1140
    %v1509 = vunpack.c.h.b16 %v1140
    %v1510 = vunpack.c.l.b16 %v1141
    %v1511 = vunpack.c.h.b16 %v1141
    %v1512 = vunpack.c.l.b16 %v1142
    %v1513 = vunpack.c.h.b16 %v1142
    %v1514 = vunpack.c.l.b16 %v1143
    %v1515 = vunpack.c.h.b16 %v1143
    %v1516 = vunpack.c.l.b16 %v1144
    %v1517 = vunpack.c.h.b16 %v1144
    %v1518 = vunpack.c.l.b16 %v1145
    %v1519 = vunpack.c.h.b16 %v1145
    %v1520 = vunpack.c.l.b16 %v1146
    %v1521 = vunpack.c.h.b16 %v1146
    %v1522 = vunpack.c.l.b16 %v1147
    %v1523 = vunpack.c.h.b16 %v1147
    %v1524 = vunpack.c.l.b16 %v1148
    %v1525 = vunpack.c.h.b16 %v1148
    %v1526 = vunpack.c.l.b16 %v1149
    %v1527 = vunpack.c.h.b16 %v1149
    %v1528 = vunpack.c.l.b16 %v1150
    %v1529 = vunpack.c.h.b16 %v1150
    %v1530 = vunpack.c.l.b16 %v1151
    %v1531 = vunpack.c.h.b16 %v1151
    %v1532 = vunpack.c.l.b16 %v1152
    %v1533 = vunpack.c.h.b16 %v1152
    %v1534 = vunpack.c.l.b16 %v1153
    %v1535 = vunpack.c.h.b16 %v1153
    %v1536 = vunpack.c.l.b16 %v1154
    %v1537 = vunpack.c.h.b16 %v1154
    %v1538 = vunpack.c.l.b16 %v1155
    %v1539 = vunpack.c.h.b16 %v1155
    %v1540 = vunpack.c.l.b16 %v1156
    %v1541 = vunpack.c.h.b16 %v1156
    %v1542 = vunpack.c.l.b16 %v1157
    %v1543 = vunpack.c.h.b16 %v1157
    %v1544 = vunpack.c.l.b16 %v1158
    %v1545 = vunpack.c.h.b16 %v1158
    %v1546 = vunpack.c.l.b16 %v1159
    %v1547 = vunpack.c.h.b16 %v1159
    %v1548 = vunpack.c.l.b16 %v1160
    %v1549 = vunpack.c.h.b16 %v1160
    %v1550 = vunpack.c.l.b16 %v1161
    %v1551 = vunpack.c.h.b16 %v1161
    %v1552 = vunpack.c.l.b16 %v1162
    %v1553 = vunpack.c.h.b16 %v1162
    %v1554 = vunpack.c.l.b16 %v1163
    %v1555 = vunpack.c.h.b16 %v1163
    %v1556 = vunpack.c.l.b16 %v1164
    %v1557 = vunpack.c.h.b16 %v1164
    %v1558 = vunpack.c.l.b16 %v1165
    %v1559 = vunpack.c.h.b16 %v1165
    %v1560 = vunpack.c.l.b16 %v1166
    %v1561 = vunpack.c.h.b16 %v1166
    %v1562 = vunpack.c.l.b16 %v1167
    %v1563 = vunpack.c.h.b16 %v1167
    %v1564 = vunpack.c.l.b16 %v1168
    %v1565 = vunpack.c.h.b16 %v1168
    %v1566 = vunpack.c.l.b16 %v1169
    %v1567 = vunpack.c.h.b16 %v1169
    %v1568 = vunpack.c.l.b16 %v1170
    %v1569 = vunpack.c.h.b16 %v1170
    %v1570 = vunpack.c.l.b16 %v1171
    %v1571 = vunpack.c.h.b16 %v1171
    %v1572 = vunpack.c.l.b16 %v1172
    %v1573 = vunpack.c.h.b16 %v1172
    %v1574 = vunpack.c.l.b16 %v1173
    %v1575 = vunpack.c.h.b16 %v1173
    %v1576 = vpack.c.b16 %v1328, %v1320
    %v1577 = vpack.c.b16 %v1329, %v1321
    %v1578 = vpack.c.b16 %v1330, %v1322
    %v1579 = vpack.c.b16 %v1331, %v1323
    %v1580 = vpack.c.b16 %v1332, %v1324
    %v1581 = vpack.c.b16 %v1333, %v1325
    %v1582 = vpack.c.b16 %v1334, %v1326
    %v1583 = vpack.c.b16 %v1335, %v1327
    %v1584 = vpack.c.b16 %v1344, %v1336
    %v1585 = vpack.c.b16 %v1345, %v1337
    %v1586 = vpack.c.b16 %v1346, %v1338
    %v1587 = vpack.c.b16 %v1347, %v1339
    %v1588 = vpack.c.b16 %v1348, %v1340
    %v1589 = vpack.c.b16 %v1349, %v1341
    %v1590 = vpack.c.b16 %v1350, %v1342
    %v1591 = vpack.c.b16 %v1351, %v1343
    %v1592 = vpack.c.b16 %v1360, %v1352
    %v1593 = vpack.c.b16 %v1361, %v1353
    %v1594 = vpack.c.b16 %v1362, %v1354
    %v1595 = vpack.c.b16 %v1363, %v1355
    %v1596 = vpack.c.b16 %v1364, %v1356
    %v1597 = vpack.c.b16 %v1365, %v1357
    %v1598 = vpack.c.b16 %v1366, %v1358
    %v1599 = vpack.c.b16 %v1367, %v1359
    %v1600 = vpack.c.b16 %v1376, %v1368
    %v1601 = vpack.c.b16 %v1377, %v1369
    %v1602 = vpack.c.b16 %v1378, %v1370
    %v1603 = vpack.c.b16 %v1379, %v1371
    %v1604 = vpack.c.b16 %v1380, %v1372
    %v1605 = vpack.c.b16 %v1381, %v1373
    %v1606 = vpack.c.b16 %v1382, %v1374
    %v1607 = vpack.c.b16 %v1383, %v1375
    %v1608 = vpack.c.b16 %v1392, %v1384
    %v1609 = vpack.c.b16 %v1393, %v1385
    %v1610 = vpack.c.b16 %v1394, %v1386
    %v1611 = vpack.c.b16 %v1395, %v1387
    %v1612 = vpack.c.b16 %v1396, %v1388
    %v1613 = vpack.c.b16 %v1397, %v1389
    %v1614 = vpack.c.b16 %v1398, %v1390
    %v1615 = vpack.c.b16 %v1399, %v1391
    %v1616 = vpack.c.b16 %v1408, %v1400
    %v1617 = vpack.c.b16 %v1409, %v1401
    %v1618 = vpack.c.b16 %v1410, %v1402
    %v1619 = vpack.c.b16 %v1411, %v1403
    %v1620 = vpack.c.b16 %v1412, %v1404
    %v1621 = vpack.c.b16 %v1413, %v1405
    %v1622 = vpack.c.b16 %v1414, %v1406
    %v1623 = vpack.c.b16 %v1415, %v1407
    %v1624 = vpack.c.b16 %v1424, %v1416
    %v1625 = vpack.c.b16 %v1425, %v1417
    %v1626 = vpack.c.b16 %v1426, %v1418
    %v1627 = vpack.c.b16 %v1427, %v1419
    %v1628 = vpack.c.b16 %v1428, %v1420
    %v1629 = vpack.c.b16 %v1429, %v1421
    %v1630 = vpack.c.b16 %v1430, %v1422
    %v1631 = vpack.c.b16 %v1431, %v1423
    %v1632 = vpack.c.b16 %v1440, %v1432
    %v1633 = vpack.c.b16 %v1441, %v1433
    %v1634 = vpack.c.b16 %v1442, %v1434
    %v1635 = vpack.c.b16 %v1443, %v1435
    %v1636 = vpack.c.b16 %v1444, %v1436
    %v1637 = vpack.c.b16 %v1445, %v1437
    %v1638 = vpack.c.b16 %v1446, %v1438
    %v1639 = vpack.c.b16 %v1447, %v1439
    %v1640 = vpack.c.b16 %v1456, %v1448
    %v1641 = vpack.c.b16 %v1457, %v1449
    %v1642 = vpack.c.b16 %v1458, %v1450
    %v1643 = vpack.c.b16 %v1459, %v1451
    %v1644 = vpack.c.b16 %v1460, %v1452
    %v1645 = vpack.c.b16 %v1461, %v1453
    %v1646 = vpack.c.b16 %v1462, %v1454
    %v1647 = vpack.c.b16 %v1463, %v1455
    %v1648 = vpack.c.b16 %v1472, %v1464
    %v1649 = vpack.c.b16 %v1473, %v1465
    %v1650 = vpack.c.b16 %v1474, %v1466
    %v1651 = vpack.c.b16 %v1475, %v1467
    %v1652 = vpack.c.b16 %v1476, %v1468
    %v1653 = vpack.c.b16 %v1477, %v1469
    %v1654 = vpack.c.b16 %v1478, %v1470
    %v1655 = vpack.c.b16 %v1479, %v1471
    %v1656 = vpack.c.b16 %v1488, %v1480
    %v1657 = vpack.c.b16 %v1489, %v1481
    %v1658 = vpack.c.b16 %v1490, %v1482
    %v1659 = vpack.c.b16 %v1491, %v1483
    %v1660 = vpack.c.b16 %v1492, %v1484
    %v1661 = vpack.c.b16 %v1493, %v1485
    %v1662 = vpack.c.b16 %v1494, %v1486
    %v1663 = vpack.c.b16 %v1495, %v1487
    %v1664 = vpack.c.b16 %v1504, %v1496
    %v1665 = vpack.c.b16 %v1505, %v1497
    %v1666 = vpack.c.b16 %v1506, %v1498
    %v1667 = vpack.c.b16 %v1507, %v1499
    %v1668 = vpack.c.b16 %v1508, %v1500
    %v1669 = vpack.c.b16 %v1509, %v1501
    %v1670 = vpack.c.b16 %v1510, %v1502
    %v1671 = vpack.c.b16 %v1511, %v1503
    %v1672 = vpack.c.b16 %v1520, %v1512
    %v1673 = vpack.c.b16 %v1521, %v1513
    %v1674 = vpack.c.b16 %v1522, %v1514
    %v1675 = vpack.c.b16 %v1523, %v1515
    %v1676 = vpack.c.b16 %v1524, %v1516
    %v1677 = vpack.c.b16 %v1525, %v1517
    %v1678 = vpack.c.b16 %v1526, %v1518
    %v1679 = vpack.c.b16 %v1527, %v1519
    %v1680 = vpack.c.b16 %v1536, %v1528
    %v1681 = vpack.c.b16 %v1537, %v1529
    %v1682 = vpack.c.b16 %v1538, %v1530
    %v1683 = vpack.c.b16 %v1539, %v1531
    %v1684 = vpack.c.b16 %v1540, %v1532
    %v1685 = vpack.c.b16 %v1541, %v1533
    %v1686 = vpack.c.b16 %v1542, %v1534
    %v1687 = vpack.c.b16 %v1543, %v1535
    %v1688 = vpack.c.b16 %v1552, %v1544
    %v1689 = vpack.c.b16 %v1553, %v1545
    %v1690 = vpack.c.b16 %v1554, %v1546
    %v1691 = vpack.c.b16 %v1555, %v1547
    %v1692 = vpack.c.b16 %v1556, %v1548
    %v1693 = vpack.c.b16 %v1557, %v1549
    %v1694 = vpack.c.b16 %v1558, %v1550
    %v1695 = vpack.c.b16 %v1559, %v1551
    %v1696 = vpack.c.b16 %v1568, %v1560
    %v1697 = vpack.c.b16 %v1569, %v1561
    %v1698 = vpack.c.b16 %v1570, %v1562
    %v1699 = vpack.c.b16 %v1571, %v1563
    %v1700 = vpack.c.b16 %v1572, %v1564
    %v1701 = vpack.c.b16 %v1573, %v1565
    %v1702 = vpack.c.b16 %v1574, %v1566
    %v1703 = vpack.c.b16 %v1575, %v1567
    %1832 = vmatpush.bf16.msra.mxu0 %v1632
    %1833 = vmatpush.bf16.msra.mxu0 %v1624
    %1834 = vmatpush.bf16.msra.mxu0 %v1616
    %1835 = vmatpush.bf16.msra.mxu0 %v1608
    %1836 = vmatpush.bf16.msra.mxu0 %v1600
    %1837 = vmatpush.bf16.msra.mxu0 %v1592
    %1838 = vmatpush.bf16.msra.mxu0 %v1584
    %1839 = vmatpush.bf16.msra.mxu0 %v1576
    %1840 = vmatmul.bf16.gmra.mxu0 %v1044
    %v1841 = vpop.f32.mrf.mxu0
    %v1842 = vadd.f32 %v1176, %v1841
    %v1843 = vpop.f32.mrf.mxu0
    %1844 = vdwg.mxu0
    %1845 = vmatpush.bf16.msra.mxu0 %v1696
    %1846 = vmatpush.bf16.msra.mxu0 %v1688
    %1847 = vmatpush.bf16.msra.mxu0 %v1680
    %1848 = vmatpush.bf16.msra.mxu0 %v1672
    %1849 = vmatpush.bf16.msra.mxu0 %v1664
    %1850 = vmatpush.bf16.msra.mxu0 %v1656
    %1851 = vmatpush.bf16.msra.mxu0 %v1648
    %1852 = vmatpush.bf16.msra.mxu0 %v1640
    %1853 = vmatmul.bf16.gmra.mxu0 %v1045
    %v1854 = vpop.f32.mrf.mxu0
    %v1855 = vadd.f32 %v1842, %v1854
    %v1856 = vpop.f32.mrf.mxu0
    %1857 = vdwg.mxu0
    %1858 = vmatpush.bf16.msra.mxu0 %v1633
    %1859 = vmatpush.bf16.msra.mxu0 %v1625
    %1860 = vmatpush.bf16.msra.mxu0 %v1617
    %1861 = vmatpush.bf16.msra.mxu0 %v1609
    %1862 = vmatpush.bf16.msra.mxu0 %v1601
    %1863 = vmatpush.bf16.msra.mxu0 %v1593
    %1864 = vmatpush.bf16.msra.mxu0 %v1585
    %1865 = vmatpush.bf16.msra.mxu0 %v1577
    %1866 = vmatmul.bf16.gmra.mxu0 %v1044
    %v1867 = vpop.f32.mrf.mxu0
    %v1868 = vadd.f32 %v1177, %v1867
    %v1869 = vpop.f32.mrf.mxu0
    %1870 = vdwg.mxu0
    %1871 = vmatpush.bf16.msra.mxu0 %v1697
    %1872 = vmatpush.bf16.msra.mxu0 %v1689
    %1873 = vmatpush.bf16.msra.mxu0 %v1681
    %1874 = vmatpush.bf16.msra.mxu0 %v1673
    %1875 = vmatpush.bf16.msra.mxu0 %v1665
    %1876 = vmatpush.bf16.msra.mxu0 %v1657
    %1877 = vmatpush.bf16.msra.mxu0 %v1649
    %1878 = vmatpush.bf16.msra.mxu0 %v1641
    %1879 = vmatmul.bf16.gmra.mxu0 %v1045
    %v1880 = vpop.f32.mrf.mxu0
    %v1881 = vadd.f32 %v1868, %v1880
    %v1882 = vpop.f32.mrf.mxu0
    %1883 = vdwg.mxu0
    %1884 = vmatpush.bf16.msra.mxu0 %v1634
    %1885 = vmatpush.bf16.msra.mxu0 %v1626
    %1886 = vmatpush.bf16.msra.mxu0 %v1618
    %1887 = vmatpush.bf16.msra.mxu0 %v1610
    %1888 = vmatpush.bf16.msra.mxu0 %v1602
    %1889 = vmatpush.bf16.msra.mxu0 %v1594
    %1890 = vmatpush.bf16.msra.mxu0 %v1586
    %1891 = vmatpush.bf16.msra.mxu0 %v1578
    %1892 = vmatmul.bf16.gmra.mxu0 %v1044
    %v1893 = vpop.f32.mrf.mxu0
    %v1894 = vadd.f32 %v1178, %v1893
    %v1895 = vpop.f32.mrf.mxu0
    %1896 = vdwg.mxu0
    %1897 = vmatpush.bf16.msra.mxu0 %v1698
    %1898 = vmatpush.bf16.msra.mxu0 %v1690
    %1899 = vmatpush.bf16.msra.mxu0 %v1682
    %1900 = vmatpush.bf16.msra.mxu0 %v1674
    %1901 = vmatpush.bf16.msra.mxu0 %v1666
    %1902 = vmatpush.bf16.msra.mxu0 %v1658
    %1903 = vmatpush.bf16.msra.mxu0 %v1650
    %1904 = vmatpush.bf16.msra.mxu0 %v1642
    %1905 = vmatmul.bf16.gmra.mxu0 %v1045
    %v1906 = vpop.f32.mrf.mxu0
    %v1907 = vadd.f32 %v1894, %v1906
    %v1908 = vpop.f32.mrf.mxu0
    %1909 = vdwg.mxu0
    %1910 = vmatpush.bf16.msra.mxu0 %v1635
    %1911 = vmatpush.bf16.msra.mxu0 %v1627
    %1912 = vmatpush.bf16.msra.mxu0 %v1619
    %1913 = vmatpush.bf16.msra.mxu0 %v1611
    %1914 = vmatpush.bf16.msra.mxu0 %v1603
    %1915 = vmatpush.bf16.msra.mxu0 %v1595
    %1916 = vmatpush.bf16.msra.mxu0 %v1587
    %1917 = vmatpush.bf16.msra.mxu0 %v1579
    %1918 = vmatmul.bf16.gmra.mxu0 %v1044
    %v1919 = vpop.f32.mrf.mxu0
    %v1920 = vadd.f32 %v1179, %v1919
    %v1921 = vpop.f32.mrf.mxu0
    %1922 = vdwg.mxu0
    %1923 = vmatpush.bf16.msra.mxu0 %v1699
    %1924 = vmatpush.bf16.msra.mxu0 %v1691
    %1925 = vmatpush.bf16.msra.mxu0 %v1683
    %1926 = vmatpush.bf16.msra.mxu0 %v1675
    %1927 = vmatpush.bf16.msra.mxu0 %v1667
    %1928 = vmatpush.bf16.msra.mxu0 %v1659
    %1929 = vmatpush.bf16.msra.mxu0 %v1651
    %1930 = vmatpush.bf16.msra.mxu0 %v1643
    %1931 = vmatmul.bf16.gmra.mxu0 %v1045
    %v1932 = vpop.f32.mrf.mxu0
    %v1933 = vadd.f32 %v1920, %v1932
    %v1934 = vpop.f32.mrf.mxu0
    %1935 = vdwg.mxu0
    %1936 = vmatpush.bf16.msra.mxu0 %v1636
    %1937 = vmatpush.bf16.msra.mxu0 %v1628
    %1938 = vmatpush.bf16.msra.mxu0 %v1620
    %1939 = vmatpush.bf16.msra.mxu0 %v1612
    %1940 = vmatpush.bf16.msra.mxu0 %v1604
    %1941 = vmatpush.bf16.msra.mxu0 %v1596
    %1942 = vmatpush.bf16.msra.mxu0 %v1588
    %1943 = vmatpush.bf16.msra.mxu0 %v1580
    %1944 = vmatmul.bf16.gmra.mxu0 %v1044
    %v1945 = vpop.f32.mrf.mxu0
    %v1946 = vadd.f32 %v1180, %v1945
    %v1947 = vpop.f32.mrf.mxu0
    %1948 = vdwg.mxu0
    %1949 = vmatpush.bf16.msra.mxu0 %v1700
    %1950 = vmatpush.bf16.msra.mxu0 %v1692
    %1951 = vmatpush.bf16.msra.mxu0 %v1684
    %1952 = vmatpush.bf16.msra.mxu0 %v1676
    %1953 = vmatpush.bf16.msra.mxu0 %v1668
    %1954 = vmatpush.bf16.msra.mxu0 %v1660
    %1955 = vmatpush.bf16.msra.mxu0 %v1652
    %1956 = vmatpush.bf16.msra.mxu0 %v1644
    %1957 = vmatmul.bf16.gmra.mxu0 %v1045
    %v1958 = vpop.f32.mrf.mxu0
    %v1959 = vadd.f32 %v1946, %v1958
    %v1960 = vpop.f32.mrf.mxu0
    %1961 = vdwg.mxu0
    %1962 = vmatpush.bf16.msra.mxu0 %v1637
    %1963 = vmatpush.bf16.msra.mxu0 %v1629
    %1964 = vmatpush.bf16.msra.mxu0 %v1621
    %1965 = vmatpush.bf16.msra.mxu0 %v1613
    %1966 = vmatpush.bf16.msra.mxu0 %v1605
    %1967 = vmatpush.bf16.msra.mxu0 %v1597
    %1968 = vmatpush.bf16.msra.mxu0 %v1589
    %1969 = vmatpush.bf16.msra.mxu0 %v1581
    %1970 = vmatmul.bf16.gmra.mxu0 %v1044
    %v1971 = vpop.f32.mrf.mxu0
    %v1972 = vadd.f32 %v1181, %v1971
    %v1973 = vpop.f32.mrf.mxu0
    %1974 = vdwg.mxu0
    %1975 = vmatpush.bf16.msra.mxu0 %v1701
    %1976 = vmatpush.bf16.msra.mxu0 %v1693
    %1977 = vmatpush.bf16.msra.mxu0 %v1685
    %1978 = vmatpush.bf16.msra.mxu0 %v1677
    %1979 = vmatpush.bf16.msra.mxu0 %v1669
    %1980 = vmatpush.bf16.msra.mxu0 %v1661
    %1981 = vmatpush.bf16.msra.mxu0 %v1653
    %1982 = vmatpush.bf16.msra.mxu0 %v1645
    %1983 = vmatmul.bf16.gmra.mxu0 %v1045
    %v1984 = vpop.f32.mrf.mxu0
    %v1985 = vadd.f32 %v1972, %v1984
    %v1986 = vpop.f32.mrf.mxu0
    %1987 = vdwg.mxu0
    %1988 = vmatpush.bf16.msra.mxu0 %v1638
    %1989 = vmatpush.bf16.msra.mxu0 %v1630
    %1990 = vmatpush.bf16.msra.mxu0 %v1622
    %1991 = vmatpush.bf16.msra.mxu0 %v1614
    %1992 = vmatpush.bf16.msra.mxu0 %v1606
    %1993 = vmatpush.bf16.msra.mxu0 %v1598
    %1994 = vmatpush.bf16.msra.mxu0 %v1590
    %1995 = vmatpush.bf16.msra.mxu0 %v1582
    %1996 = vmatmul.bf16.gmra.mxu0 %v1044
    %v1997 = vpop.f32.mrf.mxu0
    %v1998 = vadd.f32 %v1182, %v1997
    %v1999 = vpop.f32.mrf.mxu0
    %2000 = vdwg.mxu0
    %2001 = vmatpush.bf16.msra.mxu0 %v1702
    %2002 = vmatpush.bf16.msra.mxu0 %v1694
    %2003 = vmatpush.bf16.msra.mxu0 %v1686
    %2004 = vmatpush.bf16.msra.mxu0 %v1678
    %2005 = vmatpush.bf16.msra.mxu0 %v1670
    %2006 = vmatpush.bf16.msra.mxu0 %v1662
    %2007 = vmatpush.bf16.msra.mxu0 %v1654
    %2008 = vmatpush.bf16.msra.mxu0 %v1646
    %2009 = vmatmul.bf16.gmra.mxu0 %v1045
    %v2010 = vpop.f32.mrf.mxu0
    %v2011 = vadd.f32 %v1998, %v2010
    %v2012 = vpop.f32.mrf.mxu0
    %2013 = vdwg.mxu0
    %2014 = vmatpush.bf16.msra.mxu0 %v1639
    %2015 = vmatpush.bf16.msra.mxu0 %v1631
    %2016 = vmatpush.bf16.msra.mxu0 %v1623
    %2017 = vmatpush.bf16.msra.mxu0 %v1615
    %2018 = vmatpush.bf16.msra.mxu0 %v1607
    %2019 = vmatpush.bf16.msra.mxu0 %v1599
    %2020 = vmatpush.bf16.msra.mxu0 %v1591
    %2021 = vmatpush.bf16.msra.mxu0 %v1583
    %2022 = vmatmul.bf16.gmra.mxu0 %v1044
    %v2023 = vpop.f32.mrf.mxu0
    %v2024 = vadd.f32 %v1183, %v2023
    %v2025 = vpop.f32.mrf.mxu0
    %2026 = vdwg.mxu0
    %2027 = vmatpush.bf16.msra.mxu0 %v1703
    %2028 = vmatpush.bf16.msra.mxu0 %v1695
    %2029 = vmatpush.bf16.msra.mxu0 %v1687
    %2030 = vmatpush.bf16.msra.mxu0 %v1679
    %2031 = vmatpush.bf16.msra.mxu0 %v1671
    %2032 = vmatpush.bf16.msra.mxu0 %v1663
    %2033 = vmatpush.bf16.msra.mxu0 %v1655
    %2034 = vmatpush.bf16.msra.mxu0 %v1647
    %2035 = vmatmul.bf16.gmra.mxu0 %v1045
    %v2036 = vpop.f32.mrf.mxu0
    %v2037 = vadd.f32 %v2024, %v2036
    %v2038 = vpop.f32.mrf.mxu0
    %2039 = vdwg.mxu0
    %v2040 = vpack.c.bf16 %v1881, %v1855
    %v2041 = vpack.c.bf16 %v1933, %v1907
    %v2042 = vpack.c.bf16 %v1985, %v1959
    %v2043 = vpack.c.bf16 %v2037, %v2011
    %v2048 = vrot.slane %v2040, 3
    %v2049 = vrot.slane %v2041, 6
    %v2050 = vrot.slane %v2041, 1
    %v2051 = vrot.slane %v2042, 4
    %v2052 = vrot.slane %v2042, 7
    %v2053 = vrot.slane %v2043, 2
    %v2054 = vrot.slane %v2043, 5
    %vm2055 = vcmask 1040384
    %v2058 = vsel %vm2055, %v2040, %v2048
    %vm2059 = vcmask 1042434
    %v2062 = vsel %vm2059, %v2049, %v2050
    %v2063 = vsel %vm1040, %v2058, %v2062
    %vm2064 = vcmask 1044484
    %v2067 = vsel %vm2064, %v2051, %v2052
    %vm2068 = vcmask 1046534
    %v2071 = vsel %vm2068, %v2053, %v2054
    %vm2072 = vcmask 1045508
    %v2073 = vsel %vm2072, %v2067, %v2071
    %vm2074 = vcmask 1043456
    %v2075 = vsel %vm2074, %v2063, %v2073
    %2077 = vst [vmem:[#allocation4] sm:$0xff] %v2075
    // Predicated region
    $region22: #{wm_latent_forward.1} parent=1 // pred_check
      _
    $region23: #{wm_latent_forward.1} parent=1 // pred_check_branch
      %2079 = sbr.rel (0) target = $region25
    $region24: #{wm_latent_forward.1} parent=1 // pred_region
      %2081 = vsyncadd [#allocation3], 0
      %s2083 = sshll.u32 [#allocation2], 4
      %s2084 = int_to_ptr.vmem [resolvable:$true] %s2083
      %s2085 = sshll.u32 %s5, 4
      %s2086 = int_to_ptr.hbm [resolvable:$true] %s2085
      %2088 = dma.vmem_to_hbm [thread:$0]  %s2084, 64, %s2086, [#allocation3]
    $region25: #{wm_latent_forward.1} parent=1 // pred_fallthru
      _
    // Predicated region
    $region26: #{wm_latent_forward.1} parent=1 // pred_check
      _
    $region27: #{wm_latent_forward.1} parent=1 // pred_check_branch
      %2090 = sbr.rel (0) target = $region29
    $region28: #{wm_latent_forward.1} parent=1 // pred_region
      %2092 = vsyncadd [#allocation5], 0
      %s2094 = sshll.u32 [#allocation4], 4
      %s2095 = int_to_ptr.vmem [resolvable:$true] %s2094
      %s2096 = sshll.u32 %s6, 4
      %s2097 = int_to_ptr.hbm [resolvable:$true] %s2096
      %2099 = dma.vmem_to_hbm [thread:$0]  %s2095, 128, %s2097, [#allocation5]
    $region29: #{wm_latent_forward.1} parent=1 // pred_fallthru
      _
    // Predicated region
    $region30: #{wm_latent_forward.1} parent=1 // pred_check
      _
    $region31: #{wm_latent_forward.1} parent=1 // pred_check_branch
      %2101 = sbr.rel (0) target = $region33
    $region32: #{wm_latent_forward.1} parent=1 // pred_region
      %2103 = dma.done [#allocation3], 64
    $region33: #{wm_latent_forward.1} parent=1 // pred_fallthru
      _
    // Predicated region
    $region34: #{wm_latent_forward.1} parent=1 // pred_check
      _
    $region35: #{wm_latent_forward.1} parent=1 // pred_check_branch
      %2105 = sbr.rel (0) target = $region37
    $region36: #{wm_latent_forward.1} parent=1 // pred_region
      %2107 = dma.done [#allocation5], 128
    $region37: #{wm_latent_forward.1} parent=1 // pred_fallthru
      _
    %2108 = vsyncpa [#allocation3], 1
    %2109 = vsyncpa [#allocation5], 1

</llo_original>
